<compile_context>
chip_gen: v6e
topology: v6e:2x2x1
jax: 0.10.0
libtpu: 0.0.40
codegen_flags: <defaults>
</compile_context>

<pallas_src>
import jax
import jax.numpy as jnp
from jax import lax
from jax.experimental import pallas as pl
from jax.experimental.pallas import tpu as pltpu


def _round_up(x, m):
    return (x + m - 1) // m * m


def _vmem_limit_bytes(default=64 * 1024 * 1024):
    # Leave headroom under physical VMEM (128 MiB on v5e/v6e, 64 MiB per TC on v7x).
    try:
        cap = int(pltpu.get_tpu_info().vmem_capacity_bytes)
        return int(max(32 * 1024 * 1024,
                       min(cap - 16 * 1024 * 1024, 100 * 1024 * 1024)))
    except Exception:
        return default


def stack_adjacency(src, dst, etype, norm, *, num_nodes, num_rels, src_tile):
    """Scatter-add the edge list directly into the stacked (N, N*num_rels) bf16 layout
    consumed by the conv kernel:
        A_stk[v, (u//src_tile)*(src_tile*num_rels) + r*src_tile + (u%src_tile)] += norm(u->v, r)
    i.e. column order = (source tile, relation, source-local), so the relation sum becomes the
    K dimension of one big matmul.  Built directly from edges: no (R, N, N) materialization +
    transpose pass over the dominant operand."""
    norm = norm.reshape(-1)
    col = (src // src_tile) * (src_tile * num_rels) + etype * src_tile + (src % src_tile)
    A = jnp.zeros((num_nodes, num_nodes * num_rels), jnp.float32)
    A = A.at[dst, col].add(norm)
    return A.astype(jnp.bfloat16)


def _rgcn_conv_kernel(a_ref, h_ref, wrel_ref, wres_ref, params_ref,
                      y_ref, stats_ref, acc_ref, res_ref, hw_ref):
    i = pl.program_id(0)          # destination-node tile (parallel)
    k = pl.program_id(1)          # source-node tile (reduction)
    dest_tile, out_p = acc_ref.shape
    num_rels = wrel_ref.shape[1] // out_p
    src_tile = hw_ref.shape[0] // num_rels

    @pl.when(k == 0)
    def _():
        acc_ref[...] = jnp.zeros_like(acc_ref)
        # Residual branch relu(H_dst @ W_res + b_res): issued on the first reduction step so its
        # MXU work overlaps the A-tile DMAs instead of sitting on the epilogue's critical tail.
        h_dst = h_ref[pl.ds(pl.multiple_of(i * dest_tile, dest_tile), dest_tile), :]
        res_pre = jnp.dot(h_dst, wres_ref[...], preferred_element_type=jnp.float32)
        res_ref[...] = jnp.maximum(res_pre + params_ref[1:2, :], 0.0)

    # Source rows for this reduction step, sliced from the single resident H block
    # (H is DMA'd exactly once per destination grid pass -> no duplicated H stream).
    h_src = h_ref[pl.ds(pl.multiple_of(k * src_tile, src_tile), src_tile), :]

    # Fused "HW matmul + relation re-stack": per relation, dot with the 128-lane slice of the
    # stacked weights and store the (src_tile, out_p) result (cast to bf16) straight into the
    # staging scratch.  Only one relation's result is live in vregs at a time.
    for rel in range(num_rels):
        hw_r = jnp.dot(h_src, wrel_ref[:, rel * out_p:(rel + 1) * out_p],
                       preferred_element_type=jnp.float32)
        hw_ref[rel * src_tile:(rel + 1) * src_tile, :] = hw_r.astype(hw_ref.dtype)

    # Relation sum == K dim of one native bf16 x bf16 MXU matmul with f32 accumulation.
    acc_ref[...] += jnp.dot(a_ref[...], hw_ref[...], preferred_element_type=jnp.float32)

    @pl.when(k == pl.num_programs(1) - 1)
    def _():
        # RelGraphConv epilogue: + bias, ReLU (self_loop=False, dropout treated as identity),
        # then the residual branch.  BatchNorm is applied in a second pass so the statistics
        # stay exact across destination tiles (and across megacore TCs).
        conv = jnp.maximum(acc_ref[...] + params_ref[0:1, :], 0.0)
        y = conv + res_ref[...]
        y_ref[...] = y
        s = jnp.sum(y, axis=0, keepdims=True)
        ss = jnp.sum(y * y, axis=0, keepdims=True)
        stats_ref[...] = jnp.concatenate(
            [s, ss, jnp.zeros((6, out_p), jnp.float32)], axis=0)


def _bn_apply_kernel(y_ref, bnp_ref, o_ref):
    # bnp rows: 0 = mean, 1 = inv_std, 2 = gamma, 3 = beta
    y = y_ref[...]
    o_ref[...] = ((y - bnp_ref[0:1, :]) * bnp_ref[1:2, :] * bnp_ref[2:3, :]
                  + bnp_ref[3:4, :]).astype(o_ref.dtype)


def rgcn_layer_forward(A_stk, H, W, bias, W_res, b_res, gamma, beta, *,
                       num_rels, src_tile, dest_tile=None, eps=1e-5):
    """Fused RGCNLayer forward.

    A_stk  : (N, N*num_rels) bf16 stacked adjacency (see stack_adjacency); its column layout
             must have been built with the same `src_tile`.
    H      : (N, in_feats) node features
    W      : (num_rels, in_feats, out_feats) per-relation weights (basis-combined)
    bias   : (1, out_feats) RelGraphConv bias
    W_res  : (in_feats, out_feats), b_res: (1, out_feats) residual Linear parameters
    gamma, beta : (1, out_feats) BatchNorm1d affine parameters
    """
    N, in_f = H.shape
    out_f = W.shape[2]
    assert A_stk.shape == (N, N * num_rels)
    in_p = _round_up(in_f, 128)      # lane-dense contraction dim
    out_p = _round_up(out_f, 128)    # lane-dense output dim (unmasked vst)

    assert N % src_tile == 0 and src_tile % 8 == 0
    assert (src_tile * num_rels) % 128 == 0, \
        "src_tile * num_rels must be a multiple of 128 (lane dim of the A column block)"
    if dest_tile is None:
        cands = [d for d in range(8, min(N, 256) + 1, 8) if N % d == 0]
        dest_tile = max(cands) if cands else N
    assert N % dest_tile == 0 and dest_tile % 8 == 0
    nk = N // src_tile
    nd = N // dest_tile

    f32, bf16 = jnp.float32, jnp.bfloat16

    # ---- plain-JAX glue: pad features to lane-dense widths, stack weights, pack params ----
    Hp = jnp.pad(H.astype(f32), ((0, 0), (0, in_p - in_f))).astype(bf16)
    Wp = jnp.pad(W.astype(f32), ((0, 0), (0, in_p - in_f), (0, out_p - out_f)))
    # W_rel[f, r*out_p + o] = W[r, f, o]   (all relation weights side by side along lanes)
    W_rel = Wp.transpose(1, 0, 2).reshape(in_p, num_rels * out_p).astype(bf16)
    Wres_p = jnp.pad(W_res.astype(f32), ((0, in_p - in_f), (0, out_p - out_f))).astype(bf16)
    pad_o = ((0, 0), (0, out_p - out_f))
    bias_p = jnp.pad(bias.astype(f32), pad_o)
    bres_p = jnp.pad(b_res.astype(f32), pad_o)
    gamma_p = jnp.pad(gamma.astype(f32), pad_o)
    beta_p = jnp.pad(beta.astype(f32), pad_o)
    conv_params = jnp.concatenate(
        [bias_p, bres_p, jnp.zeros((6, out_p), f32)], axis=0)   # rows: 0 bias, 1 b_res

    vmem_limit = _vmem_limit_bytes()

    # ---- pass 1: message passing + bias + ReLU + residual; per-tile BN partial stats ----
    y, stats = pl.pallas_call(
        _rgcn_conv_kernel,
        out_shape=(jax.ShapeDtypeStruct((N, out_p), f32),
                   jax.ShapeDtypeStruct((nd * 8, out_p), f32)),
        grid_spec=pltpu.PrefetchScalarGridSpec(
            num_scalar_prefetch=0,
            grid=(nd, nk),
            in_specs=[
                pl.BlockSpec((dest_tile, src_tile * num_rels), lambda i, k: (i, k)),  # A tile
                pl.BlockSpec((N, in_p), lambda i, k: (0, 0)),                  # H, resident
                pl.BlockSpec((in_p, num_rels * out_p), lambda i, k: (0, 0)),   # stacked rel W
                pl.BlockSpec((in_p, out_p), lambda i, k: (0, 0)),              # residual W
                pl.BlockSpec((8, out_p), lambda i, k: (0, 0)),                 # bias / b_res
            ],
            out_specs=[
                pl.BlockSpec((dest_tile, out_p), lambda i, k: (i, 0)),         # y (pre-BN)
                pl.BlockSpec((8, out_p), lambda i, k: (i, 0)),                 # partial stats
            ],
            scratch_shapes=[
                pltpu.VMEM((dest_tile, out_p), f32),                 # conv accumulator
                pltpu.VMEM((dest_tile, out_p), f32),                 # residual branch
                pltpu.VMEM((src_tile * num_rels, out_p), bf16),      # stacked HW staging (bf16)
            ],
        ),
        compiler_params=pltpu.CompilerParams(
            dimension_semantics=("parallel", "arbitrary"),
            vmem_limit_bytes=vmem_limit,
        ),
    )(A_stk, Hp, W_rel, Wres_p, conv_params)

    # ---- tiny cross-tile reduction for exact training-mode BatchNorm statistics ----
    stats = stats.reshape(nd, 8, out_p)
    mean = jnp.sum(stats[:, 0, :], axis=0, keepdims=True) / N
    var = jnp.maximum(jnp.sum(stats[:, 1, :], axis=0, keepdims=True) / N - mean * mean, 0.0)
    inv_std = lax.rsqrt(var + eps)
    bn_params = jnp.concatenate(
        [mean, inv_std, gamma_p, beta_p, jnp.zeros((4, out_p), f32)], axis=0)

    # ---- pass 2: elementwise BatchNorm application, tiled over the destination axis ----
    out = pl.pallas_call(
        _bn_apply_kernel,
        out_shape=jax.ShapeDtypeStruct((N, out_p), f32),
        grid_spec=pltpu.PrefetchScalarGridSpec(
            num_scalar_prefetch=0,
            grid=(nd,),
            in_specs=[
                pl.BlockSpec((dest_tile, out_p), lambda i: (i, 0)),
                pl.BlockSpec((8, out_p), lambda i: (0, 0)),
            ],
            out_specs=pl.BlockSpec((dest_tile, out_p), lambda i: (i, 0)),
        ),
        compiler_params=pltpu.CompilerParams(
            dimension_semantics=("parallel",),
            vmem_limit_bytes=vmem_limit,
        ),
    )(y, bn_params)

    return out[:, :out_f]


def ref_forward(A, H, W, bias, W_res, b_res, gamma, beta):
    conv = jnp.einsum("rvu,uf,rfo->vo", A, H, W)
    conv = jnp.maximum(conv + bias, 0.0)
    res = jnp.maximum(H @ W_res + b_res, 0.0)
    y = conv + res
    mean = jnp.mean(y, axis=0, keepdims=True)
    var = jnp.mean((y - mean) ** 2, axis=0, keepdims=True)
    return (y - mean) * lax.rsqrt(var + 1e-5) * gamma + beta


if __name__ == "__main__":
    N, in_feats, out_feats, num_rels, E = 64, 32, 32, 8, 256
    src_tile, dest_tile = 32, 32   # 2 reduction steps (K=256/step), 2 parallel dest tiles
    key = jax.random.PRNGKey(0)
    ks = jax.random.split(key, 10)

    # graph (edge list), node features, edge norms
    src = jax.random.randint(ks[0], (E,), 0, N)
    dst = jax.random.randint(ks[1], (E,), 0, N)
    etype = jax.random.randint(ks[2], (E,), 0, num_rels)
    norm = jax.random.uniform(ks[3], (E, 1), jnp.float32)
    node_feats = jax.random.normal(ks[4], (N, in_feats), jnp.float32)

    # RelGraphConv basis parameters (num_bases = num_rels) -> effective per-relation weights
    basis = jax.random.normal(ks[5], (num_rels, in_feats, out_feats), jnp.float32) * 0.1
    w_comp = jax.random.normal(ks[6], (num_rels, num_rels), jnp.float32) * 0.1
    W = jnp.einsum("rb,bio->rio", w_comp, basis)
    bias = jax.random.normal(ks[7], (1, out_feats), jnp.float32) * 0.1

    # residual Linear + BatchNorm1d parameters
    W_res = jax.random.normal(ks[8], (in_feats, out_feats), jnp.float32) * 0.1
    b_res = jax.random.normal(ks[9], (1, out_feats), jnp.float32) * 0.1
    gamma = jnp.ones((1, out_feats), jnp.float32)
    beta = jnp.zeros((1, out_feats), jnp.float32)

    # Stacked adjacency built directly from the edge list (kernel operand), plus the dense
    # (R, N, N) view of the SAME bf16 values for the f32 reference.
    A_stk = stack_adjacency(src, dst, etype, norm, num_nodes=N, num_rels=num_rels,
                            src_tile=src_tile)
    A_dense = (A_stk.astype(jnp.float32)
               .reshape(N, N // src_tile, num_rels, src_tile)
               .transpose(2, 0, 1, 3)
               .reshape(num_rels, N, N))

    # The kernel feeds bf16 operands to the MXU; compute the reference on bf16-rounded values so
    # the comparison only measures the kernel's extra bf16 staging rounding.
    q = lambda x: x.astype(jnp.bfloat16).astype(jnp.float32)
    node_q, W_q, Wres_q = q(node_feats), q(W), q(W_res)

    out = rgcn_layer_forward(A_stk, node_q, W_q, bias, Wres_q, b_res, gamma, beta,
                             num_rels=num_rels, src_tile=src_tile, dest_tile=dest_tile)
    out = jax.block_until_ready(out)

    ref = ref_forward(A_dense, node_q, W_q, bias, Wres_q, b_res, gamma, beta)
    assert out.shape == (N, out_feats)
    err = float(jnp.max(jnp.abs(out - ref)))
    # bf16 MXU inputs + bf16 HW staging -> allow ~1e-2 absolute after BatchNorm normalization.
    assert jnp.allclose(out, ref, atol=1e-2, rtol=1e-2), err
    print("KERNEL_OK")
</pallas_src>

<mosaic_0001>
module attributes {stable_mosaic.version = 11 : i64} {
  func.func @_rgcn_conv_kernel(%arg0: i32, %arg1: i32, %arg2: memref<32x256xbf16, #tpu.memory_space<vmem>>, %arg3: memref<64x128xbf16, #tpu.memory_space<vmem>>, %arg4: memref<128x1024xbf16, #tpu.memory_space<vmem>>, %arg5: memref<128x128xbf16, #tpu.memory_space<vmem>>, %arg6: memref<8x128xf32, #tpu.memory_space<vmem>>, %arg7: memref<32x128xf32, #tpu.memory_space<vmem>>, %arg8: memref<8x128xf32, #tpu.memory_space<vmem>>, %arg9: memref<32x128xf32, #tpu.memory_space<vmem>>, %arg10: memref<32x128xf32, #tpu.memory_space<vmem>>, %arg11: memref<256x128xbf16, #tpu.memory_space<vmem>>) attributes {dimension_semantics = [#tpu.dimension_semantics<parallel>, #tpu.dimension_semantics<arbitrary>], iteration_bounds = array<i64: 2, 2>, scalar_prefetch = 0 : i64, scratch_operands = 3 : i64, tpu.core_type = #tpu.core_type<tc>, window_params = [{transform_indices = @transform_0, window_bounds = array<i64: 32, 256>}, {pipeline_mode = #tpu.pipeline_mode<synchronous>, transform_indices = @transform_1, window_bounds = array<i64: 64, 128>}, {pipeline_mode = #tpu.pipeline_mode<synchronous>, transform_indices = @transform_2, window_bounds = array<i64: 128, 1024>}, {pipeline_mode = #tpu.pipeline_mode<synchronous>, transform_indices = @transform_3, window_bounds = array<i64: 128, 128>}, {pipeline_mode = #tpu.pipeline_mode<synchronous>, transform_indices = @transform_4, window_bounds = array<i64: 8, 128>}, {transform_indices = @transform_5, window_bounds = array<i64: 32, 128>}, {transform_indices = @transform_6, window_bounds = array<i64: 8, 128>}]} {
    %c0_i32 = arith.constant 0 : i32
    %0 = arith.cmpi eq, %arg1, %c0_i32 : i32
    %1 = arith.extui %0 : i1 to i32
    %c0_i32_0 = arith.constant 0 : i32
    %2 = arith.cmpi ne, %1, %c0_i32_0 : i32
    scf.if %2 {
      %cst_37 = arith.constant 0.000000e+00 : f32
      %48 = vector.broadcast %cst_37 : f32 to vector<32x128xf32>
      %c0_38 = arith.constant 0 : index
      %c0_39 = arith.constant 0 : index
      %49 = vector.load %arg9[%c0_38, %c0_39] : memref<32x128xf32, #tpu.memory_space<vmem>>, vector<32x128xf32>
      tpu.vector_store %arg9[%c0_38, %c0_39], %48 {strides = array<i32>} : memref<32x128xf32, #tpu.memory_space<vmem>>, vector<32x128xf32>,
      %c32_i32_40 = arith.constant 32 : i32
      %50 = arith.muli %arg0, %c32_i32_40 : i32
      %51 = tpu.assume_multiple %50, 32 : i32
      %52 = arith.index_cast %51 : i32 to index
      %c0_41 = arith.constant 0 : index
      %53 = vector.load %arg3[%52, %c0_41] : memref<64x128xbf16, #tpu.memory_space<vmem>>, vector<32x128xbf16>
      %c0_42 = arith.constant 0 : index
      %c0_43 = arith.constant 0 : index
      %54 = vector.load %arg5[%c0_42, %c0_43] : memref<128x128xbf16, #tpu.memory_space<vmem>>, vector<128x128xbf16>
      %cst_44 = arith.constant dense<0.000000e+00> : vector<32x128xf32>
      %55 = tpu.matmul %53, %54, %cst_44 {dimension_numbers = #tpu.dot_dimension_numbers<[1], [0], [0], [1], [0, 0, 1, 1], [], []>} : vector<32x128xbf16>, vector<128x128xbf16>, vector<32x128xf32> -> vector<32x128xf32>
      %c1 = arith.constant 1 : index
      %c0_45 = arith.constant 0 : index
      %56 = vector.load %arg6[%c1, %c0_45] : memref<8x128xf32, #tpu.memory_space<vmem>>, vector<1x128xf32>
      %57 = vector.broadcast %56 : vector<1x128xf32> to vector<32x128xf32>
      %58 = arith.addf %55, %57 : vector<32x128xf32>
      %cst_46 = arith.constant 0.000000e+00 : f32
      %59 = vector.broadcast %cst_46 : f32 to vector<32x128xf32>
      %60 = arith.maximumf %58, %59 : vector<32x128xf32>
      %c0_47 = arith.constant 0 : index
      %c0_48 = arith.constant 0 : index
      %61 = vector.load %arg10[%c0_47, %c0_48] : memref<32x128xf32, #tpu.memory_space<vmem>>, vector<32x128xf32>
      tpu.vector_store %arg10[%c0_47, %c0_48], %60 {strides = array<i32>} : memref<32x128xf32, #tpu.memory_space<vmem>>, vector<32x128xf32>,
    } else {
    }
    %c32_i32 = arith.constant 32 : i32
    %3 = arith.muli %arg1, %c32_i32 : i32
    %4 = tpu.assume_multiple %3, 32 : i32
    %5 = arith.index_cast %4 : i32 to index
    %c0 = arith.constant 0 : index
    %6 = vector.load %arg3[%5, %c0] : memref<64x128xbf16, #tpu.memory_space<vmem>>, vector<32x128xbf16>
    %c0_1 = arith.constant 0 : index
    %c0_2 = arith.constant 0 : index
    %7 = vector.load %arg4[%c0_1, %c0_2] : memref<128x1024xbf16, #tpu.memory_space<vmem>>, vector<128x128xbf16>
    %cst = arith.constant dense<0.000000e+00> : vector<32x128xf32>
    %8 = tpu.matmul %6, %7, %cst {dimension_numbers = #tpu.dot_dimension_numbers<[1], [0], [0], [1], [0, 0, 1, 1], [], []>} : vector<32x128xbf16>, vector<128x128xbf16>, vector<32x128xf32> -> vector<32x128xf32>
    %9 = arith.truncf %8 : vector<32x128xf32> to vector<32x128xbf16>
    %c0_3 = arith.constant 0 : index
    %c0_4 = arith.constant 0 : index
    %10 = vector.load %arg11[%c0_3, %c0_4] : memref<256x128xbf16, #tpu.memory_space<vmem>>, vector<32x128xbf16>
    tpu.vector_store %arg11[%c0_3, %c0_4], %9 {strides = array<i32>} : memref<256x128xbf16, #tpu.memory_space<vmem>>, vector<32x128xbf16>,
    %c0_5 = arith.constant 0 : index
    %c128 = arith.constant 128 : index
    %11 = vector.load %arg4[%c0_5, %c128] : memref<128x1024xbf16, #tpu.memory_space<vmem>>, vector<128x128xbf16>
    %cst_6 = arith.constant dense<0.000000e+00> : vector<32x128xf32>
    %12 = tpu.matmul %6, %11, %cst_6 {dimension_numbers = #tpu.dot_dimension_numbers<[1], [0], [0], [1], [0, 0, 1, 1], [], []>} : vector<32x128xbf16>, vector<128x128xbf16>, vector<32x128xf32> -> vector<32x128xf32>
    %13 = arith.truncf %12 : vector<32x128xf32> to vector<32x128xbf16>
    %c32 = arith.constant 32 : index
    %c0_7 = arith.constant 0 : index
    %14 = vector.load %arg11[%c32, %c0_7] : memref<256x128xbf16, #tpu.memory_space<vmem>>, vector<32x128xbf16>
    tpu.vector_store %arg11[%c32, %c0_7], %13 {strides = array<i32>} : memref<256x128xbf16, #tpu.memory_space<vmem>>, vector<32x128xbf16>,
    %c0_8 = arith.constant 0 : index
    %c256 = arith.constant 256 : index
    %15 = vector.load %arg4[%c0_8, %c256] : memref<128x1024xbf16, #tpu.memory_space<vmem>>, vector<128x128xbf16>
    %cst_9 = arith.constant dense<0.000000e+00> : vector<32x128xf32>
    %16 = tpu.matmul %6, %15, %cst_9 {dimension_numbers = #tpu.dot_dimension_numbers<[1], [0], [0], [1], [0, 0, 1, 1], [], []>} : vector<32x128xbf16>, vector<128x128xbf16>, vector<32x128xf32> -> vector<32x128xf32>
    %17 = arith.truncf %16 : vector<32x128xf32> to vector<32x128xbf16>
    %c64 = arith.constant 64 : index
    %c0_10 = arith.constant 0 : index
    %18 = vector.load %arg11[%c64, %c0_10] : memref<256x128xbf16, #tpu.memory_space<vmem>>, vector<32x128xbf16>
    tpu.vector_store %arg11[%c64, %c0_10], %17 {strides = array<i32>} : memref<256x128xbf16, #tpu.memory_space<vmem>>, vector<32x128xbf16>,
    %c0_11 = arith.constant 0 : index
    %c384 = arith.constant 384 : index
    %19 = vector.load %arg4[%c0_11, %c384] : memref<128x1024xbf16, #tpu.memory_space<vmem>>, vector<128x128xbf16>
    %cst_12 = arith.constant dense<0.000000e+00> : vector<32x128xf32>
    %20 = tpu.matmul %6, %19, %cst_12 {dimension_numbers = #tpu.dot_dimension_numbers<[1], [0], [0], [1], [0, 0, 1, 1], [], []>} : vector<32x128xbf16>, vector<128x128xbf16>, vector<32x128xf32> -> vector<32x128xf32>
    %21 = arith.truncf %20 : vector<32x128xf32> to vector<32x128xbf16>
    %c96 = arith.constant 96 : index
    %c0_13 = arith.constant 0 : index
    %22 = vector.load %arg11[%c96, %c0_13] : memref<256x128xbf16, #tpu.memory_space<vmem>>, vector<32x128xbf16>
    tpu.vector_store %arg11[%c96, %c0_13], %21 {strides = array<i32>} : memref<256x128xbf16, #tpu.memory_space<vmem>>, vector<32x128xbf16>,
    %c0_14 = arith.constant 0 : index
    %c512 = arith.constant 512 : index
    %23 = vector.load %arg4[%c0_14, %c512] : memref<128x1024xbf16, #tpu.memory_space<vmem>>, vector<128x128xbf16>
    %cst_15 = arith.constant dense<0.000000e+00> : vector<32x128xf32>
    %24 = tpu.matmul %6, %23, %cst_15 {dimension_numbers = #tpu.dot_dimension_numbers<[1], [0], [0], [1], [0, 0, 1, 1], [], []>} : vector<32x128xbf16>, vector<128x128xbf16>, vector<32x128xf32> -> vector<32x128xf32>
    %25 = arith.truncf %24 : vector<32x128xf32> to vector<32x128xbf16>
    %c128_16 = arith.constant 128 : index
    %c0_17 = arith.constant 0 : index
    %26 = vector.load %arg11[%c128_16, %c0_17] : memref<256x128xbf16, #tpu.memory_space<vmem>>, vector<32x128xbf16>
    tpu.vector_store %arg11[%c128_16, %c0_17], %25 {strides = array<i32>} : memref<256x128xbf16, #tpu.memory_space<vmem>>, vector<32x128xbf16>,
    %c0_18 = arith.constant 0 : index
    %c640 = arith.constant 640 : index
    %27 = vector.load %arg4[%c0_18, %c640] : memref<128x1024xbf16, #tpu.memory_space<vmem>>, vector<128x128xbf16>
    %cst_19 = arith.constant dense<0.000000e+00> : vector<32x128xf32>
    %28 = tpu.matmul %6, %27, %cst_19 {dimension_numbers = #tpu.dot_dimension_numbers<[1], [0], [0], [1], [0, 0, 1, 1], [], []>} : vector<32x128xbf16>, vector<128x128xbf16>, vector<32x128xf32> -> vector<32x128xf32>
    %29 = arith.truncf %28 : vector<32x128xf32> to vector<32x128xbf16>
    %c160 = arith.constant 160 : index
    %c0_20 = arith.constant 0 : index
    %30 = vector.load %arg11[%c160, %c0_20] : memref<256x128xbf16, #tpu.memory_space<vmem>>, vector<32x128xbf16>
    tpu.vector_store %arg11[%c160, %c0_20], %29 {strides = array<i32>} : memref<256x128xbf16, #tpu.memory_space<vmem>>, vector<32x128xbf16>,
    %c0_21 = arith.constant 0 : index
    %c768 = arith.constant 768 : index
    %31 = vector.load %arg4[%c0_21, %c768] : memref<128x1024xbf16, #tpu.memory_space<vmem>>, vector<128x128xbf16>
    %cst_22 = arith.constant dense<0.000000e+00> : vector<32x128xf32>
    %32 = tpu.matmul %6, %31, %cst_22 {dimension_numbers = #tpu.dot_dimension_numbers<[1], [0], [0], [1], [0, 0, 1, 1], [], []>} : vector<32x128xbf16>, vector<128x128xbf16>, vector<32x128xf32> -> vector<32x128xf32>
    %33 = arith.truncf %32 : vector<32x128xf32> to vector<32x128xbf16>
    %c192 = arith.constant 192 : index
    %c0_23 = arith.constant 0 : index
    %34 = vector.load %arg11[%c192, %c0_23] : memref<256x128xbf16, #tpu.memory_space<vmem>>, vector<32x128xbf16>
    tpu.vector_store %arg11[%c192, %c0_23], %33 {strides = array<i32>} : memref<256x128xbf16, #tpu.memory_space<vmem>>, vector<32x128xbf16>,
    %c0_24 = arith.constant 0 : index
    %c896 = arith.constant 896 : index
    %35 = vector.load %arg4[%c0_24, %c896] : memref<128x1024xbf16, #tpu.memory_space<vmem>>, vector<128x128xbf16>
    %cst_25 = arith.constant dense<0.000000e+00> : vector<32x128xf32>
    %36 = tpu.matmul %6, %35, %cst_25 {dimension_numbers = #tpu.dot_dimension_numbers<[1], [0], [0], [1], [0, 0, 1, 1], [], []>} : vector<32x128xbf16>, vector<128x128xbf16>, vector<32x128xf32> -> vector<32x128xf32>
    %37 = arith.truncf %36 : vector<32x128xf32> to vector<32x128xbf16>
    %c224 = arith.constant 224 : index
    %c0_26 = arith.constant 0 : index
    %38 = vector.load %arg11[%c224, %c0_26] : memref<256x128xbf16, #tpu.memory_space<vmem>>, vector<32x128xbf16>
    tpu.vector_store %arg11[%c224, %c0_26], %37 {strides = array<i32>} : memref<256x128xbf16, #tpu.memory_space<vmem>>, vector<32x128xbf16>,
    %c0_27 = arith.constant 0 : index
    %c0_28 = arith.constant 0 : index
    %39 = vector.load %arg9[%c0_27, %c0_28] : memref<32x128xf32, #tpu.memory_space<vmem>>, vector<32x128xf32>
    %c0_29 = arith.constant 0 : index
    %c0_30 = arith.constant 0 : index
    %40 = vector.load %arg2[%c0_29, %c0_30] : memref<32x256xbf16, #tpu.memory_space<vmem>>, vector<32x256xbf16>
    %c0_31 = arith.constant 0 : index
    %c0_32 = arith.constant 0 : index
    %41 = vector.load %arg11[%c0_31, %c0_32] : memref<256x128xbf16, #tpu.memory_space<vmem>>, vector<256x128xbf16>
    %cst_33 = arith.constant dense<0.000000e+00> : vector<32x128xf32>
    %42 = tpu.matmul %40, %41, %cst_33 {dimension_numbers = #tpu.dot_dimension_numbers<[1], [0], [0], [1], [0, 0, 1, 1], [], []>} : vector<32x256xbf16>, vector<256x128xbf16>, vector<32x128xf32> -> vector<32x128xf32>
    %43 = arith.addf %39, %42 : vector<32x128xf32>
    %c0_34 = arith.constant 0 : index
    %c0_35 = arith.constant 0 : index
    %44 = vector.load %arg9[%c0_34, %c0_35] : memref<32x128xf32, #tpu.memory_space<vmem>>, vector<32x128xf32>
    tpu.vector_store %arg9[%c0_34, %c0_35], %43 {strides = array<i32>} : memref<32x128xf32, #tpu.memory_space<vmem>>, vector<32x128xf32>,
    %c1_i32 = arith.constant 1 : i32
    %45 = arith.cmpi eq, %arg1, %c1_i32 : i32
    %46 = arith.extui %45 : i1 to i32
    %c0_i32_36 = arith.constant 0 : i32
    %47 = arith.cmpi ne, %46, %c0_i32_36 : i32
    scf.if %47 {
      %c0_37 = arith.constant 0 : index
      %c0_38 = arith.constant 0 : index
      %48 = vector.load %arg9[%c0_37, %c0_38] : memref<32x128xf32, #tpu.memory_space<vmem>>, vector<32x128xf32>
      %c0_39 = arith.constant 0 : index
      %c0_40 = arith.constant 0 : index
      %49 = vector.load %arg6[%c0_39, %c0_40] : memref<8x128xf32, #tpu.memory_space<vmem>>, vector<1x128xf32>
      %50 = vector.broadcast %49 : vector<1x128xf32> to vector<32x128xf32>
      %51 = arith.addf %48, %50 : vector<32x128xf32>
      %cst_41 = arith.constant 0.000000e+00 : f32
      %52 = vector.broadcast %cst_41 : f32 to vector<32x128xf32>
      %53 = arith.maximumf %51, %52 : vector<32x128xf32>
      %c0_42 = arith.constant 0 : index
      %c0_43 = arith.constant 0 : index
      %54 = vector.load %arg10[%c0_42, %c0_43] : memref<32x128xf32, #tpu.memory_space<vmem>>, vector<32x128xf32>
      %55 = arith.addf %53, %54 : vector<32x128xf32>
      %c0_44 = arith.constant 0 : index
      %c0_45 = arith.constant 0 : index
      %56 = vector.load %arg7[%c0_44, %c0_45] : memref<32x128xf32, #tpu.memory_space<vmem>>, vector<32x128xf32>
      tpu.vector_store %arg7[%c0_44, %c0_45], %55 {strides = array<i32>} : memref<32x128xf32, #tpu.memory_space<vmem>>, vector<32x128xf32>,
      %cst_46 = arith.constant dense<0.000000e+00> : vector<128xf32>
      %57 = vector.multi_reduction <add>, %55, %cst_46 [0] : vector<32x128xf32> to vector<128xf32>
      %58 = vector.shape_cast %57 : vector<128xf32> to vector<1x128xf32>
      %59 = arith.mulf %55, %55 : vector<32x128xf32>
      %cst_47 = arith.constant dense<0.000000e+00> : vector<128xf32>
      %60 = vector.multi_reduction <add>, %59, %cst_47 [0] : vector<32x128xf32> to vector<128xf32>
      %61 = vector.shape_cast %60 : vector<128xf32> to vector<1x128xf32>
      %cst_48 = arith.constant 0.000000e+00 : f32
      %62 = vector.broadcast %cst_48 : f32 to vector<6x128xf32>
      %63 = tpu.concatenate %58, %61, %62 in 0 : vector<1x128xf32>, vector<1x128xf32>, vector<6x128xf32> -> vector<8x128xf32>
      %c0_49 = arith.constant 0 : index
      %c0_50 = arith.constant 0 : index
      %64 = vector.load %arg8[%c0_49, %c0_50] : memref<8x128xf32, #tpu.memory_space<vmem>>, vector<8x128xf32>
      tpu.vector_store %arg8[%c0_49, %c0_50], %63 {strides = array<i32>} : memref<8x128xf32, #tpu.memory_space<vmem>>, vector<8x128xf32>,
    } else {
    }
    return
  }
  func.func @transform_0(%arg0: i32, %arg1: i32) -> (i32, i32) {
    %c0_i32 = arith.constant 0 : i32
    return %arg0, %arg1 : i32, i32
  }
  func.func @transform_1(%arg0: i32, %arg1: i32) -> (i32, i32) {
    %c0_i32 = arith.constant 0 : i32
    %c0_i32_0 = arith.constant 0 : i32
    %c0_i32_1 = arith.constant 0 : i32
    return %c0_i32, %c0_i32_0 : i32, i32
  }
  func.func @transform_2(%arg0: i32, %arg1: i32) -> (i32, i32) {
    %c0_i32 = arith.constant 0 : i32
    %c0_i32_0 = arith.constant 0 : i32
    %c0_i32_1 = arith.constant 0 : i32
    return %c0_i32, %c0_i32_0 : i32, i32
  }
  func.func @transform_3(%arg0: i32, %arg1: i32) -> (i32, i32) {
    %c0_i32 = arith.constant 0 : i32
    %c0_i32_0 = arith.constant 0 : i32
    %c0_i32_1 = arith.constant 0 : i32
    return %c0_i32, %c0_i32_0 : i32, i32
  }
  func.func @transform_4(%arg0: i32, %arg1: i32) -> (i32, i32) {
    %c0_i32 = arith.constant 0 : i32
    %c0_i32_0 = arith.constant 0 : i32
    %c0_i32_1 = arith.constant 0 : i32
    return %c0_i32, %c0_i32_0 : i32, i32
  }
  func.func @transform_5(%arg0: i32, %arg1: i32) -> (i32, i32) {
    %c0_i32 = arith.constant 0 : i32
    %c0_i32_0 = arith.constant 0 : i32
    return %arg0, %c0_i32 : i32, i32
  }
  func.func @transform_6(%arg0: i32, %arg1: i32) -> (i32, i32) {
    %c0_i32 = arith.constant 0 : i32
    %c0_i32_0 = arith.constant 0 : i32
    return %arg0, %c0_i32 : i32, i32
  }
}

</mosaic_0001>

<llo_original>
// kernel: tpu_custom_call.1
$region0: #{tpu_custom_call.1}
  #allocation0 [shape = 'u32[]', space=smem, size = 0x4, offset = 0x4, fixed_abs, tag = 'smem constant byte address 0x4 - core index']
  #allocation1 [shape = 'u32[144,128]{1,0:T(1,128)}', space=vmem, size = 0x12000, scoped, tag = 'internal scratch']
  #allocation2 [shape = 'f32[32,128]{1,0:T(8,128)}', space=vmem, size = 0x4000, scoped, tag = 'scratch operand']
  #allocation3 [shape = 'f32[32,128]{1,0:T(8,128)}', space=vmem, size = 0x4000, scoped, tag = 'scratch operand']
  #allocation4 [shape = 'bf16[256,128]{1,0:T(8,128)(2,1)}', space=vmem, size = 0x10000, scoped, tag = 'scratch operand']
  %s0 = inlined_call_operand.hbm [shape: bf16[64,512], index: 0, kind: input, shape index: {}]
  %s1 = inlined_call_operand.hbm [shape: bf16[64,128], index: 1, kind: input, shape index: {}]
  %s2 = inlined_call_operand.hbm [shape: bf16[128,1024], index: 2, kind: input, shape index: {}]
  %s3 = inlined_call_operand.hbm [shape: bf16[128,128], index: 3, kind: input, shape index: {}]
  %s4 = inlined_call_operand.hbm [shape: f32[8,128], index: 4, kind: input, shape index: {}]
  %s5 = inlined_call_operand.hbm [shape: f32[64,128], index: 5, kind: output, shape index: {0}]
  %s6 = inlined_call_operand.hbm [shape: f32[16,128], index: 6, kind: output, shape index: {1}]
  %7 = xla_tuple %s5, %s6
  %s8 = sld [smem:[#allocation0]]
  $region89: #{tpu_custom_call.1} parent=0
    _
  %s10 = ssub.s32 1, %s8
  %s11 = scalar_select 0, %s10, %s8
  $region1: #{tpu_custom_call.1} parent=0
    #allocation5 [shape = 'u8[32768]{0}', space=vmem, size = 0x8000, scoped, tag = 'input window, operand 0']
    #allocation6 [shape = 's32[2]{0}', space=sflag, size = 0x8, scoped, tag = 'scoped memory for tpu_custom_call.1']
    #allocation7 [shape = 's32[2]{0}', space=sflag, size = 0x8, scoped, tag = 'scoped memory for tpu_custom_call.1']
    #allocation8 [shape = 'u8[16384]{0}', space=vmem, size = 0x4000, scoped, tag = 'input window, operand 1, single buffered']
    #allocation9 [shape = 's32[1]{0}', space=sflag, size = 0x4, scoped, tag = 'scoped memory for tpu_custom_call.1']
    #allocation10 [shape = 'u8[262144]{0}', space=vmem, size = 0x40000, scoped, tag = 'input window, operand 2, single buffered']
    #allocation11 [shape = 'u8[32768]{0}', space=vmem, size = 0x8000, scoped, tag = 'input window, operand 3, single buffered']
    #allocation12 [shape = 's32[1]{0}', space=sflag, size = 0x4, scoped, tag = 'scoped memory for tpu_custom_call.1']
    #allocation13 [shape = 'u8[4096]{0}', space=vmem, size = 0x1000, scoped, tag = 'input window, operand 4, single buffered']
    #allocation14 [shape = 'u8[32768]{0}', space=vmem, size = 0x8000, scoped, tag = 'output window, operand 0']
    #allocation15 [shape = 'u8[8192]{0}', space=vmem, size = 0x2000, scoped, tag = 'output window, operand 1']
    #allocation16 [shape = 's32[2]{0}', space=sflag, size = 0x8, scoped, tag = 'scoped memory for tpu_custom_call.1']
    %12 = vsyncpa [#allocation6], 0
    %s13 = scalar_lea.sflag [#allocation6], 1
    %14 = vsyncpa %s13, 0
    %15 = vsyncpa [#allocation9], 0
    %16 = vsyncpa [#allocation12], 0
    %17 = vsyncpa [#allocation7], 0
    %s18 = scalar_lea.sflag [#allocation7], 1
    %19 = vsyncpa %s18, 0
    %20 = vsyncpa [#allocation16], 0
    %s21 = scalar_lea.sflag [#allocation16], 1
    %22 = vsyncpa %s21, 0
    loop: start=0, step=1, limit=6
    $region2: #{tpu_custom_call.1} parent=1 // loop_pre_header
      _
    $region3: #{tpu_custom_call.1} parent=1 // loop_header
      %s24 = sphi 0, %s28
      %p25 = scmp.ge.s32.totalorder %s24, 6
      %s31 = sphi 0, %s43
      %s32 = sphi 0, %s39
      %s33 = sphi 0, %s31
      %s34 = sphi 0, %s32
      %s35 = sphi 0, %s33
      %s36 = sphi 0, %s34
      %s48 = sphi 0, %s50
      %s51 = sphi 0, %s48
      %s52 = sphi 0, %s51
      %s68 = sphi 0, %s52
      %s72 = sphi 0, %s72
      %s74 = sphi 0, %s72
      %s75 = sphi 0, %s74
      %s89 = sphi 0, %s75
      %s93 = sphi 0, %s93
      %s95 = sphi 0, %s93
      %s96 = sphi 0, %s95
      %s110 = sphi 0, %s96
      %s114 = sphi 0, %s114
      %s116 = sphi 0, %s114
      %s117 = sphi 0, %s116
      %s131 = sphi 0, %s117
      %s135 = sphi 0, %s135
      %s137 = sphi 0, %s135
      %s138 = sphi 0, %s137
      %s152 = sphi 0, %s138
      %s158 = sphi 0, %s160
      %s161 = sphi 0, %s158
      %s162 = sphi 0, %s161
      %s178 = sphi 0, %s162
      %s184 = sphi 0, %s186
      %s187 = sphi 0, %s184
      %s188 = sphi 0, %s187
      %s204 = sphi 0, %s188
    $region4: #{tpu_custom_call.1} parent=1 // loop_header_branch
      %27 = sbr.rel (%p25) target = $region8
    $region5: #{tpu_custom_call.1} parent=1 // loop_body
      %s29 = ssub.s32 %s24, 1
      %s30 = ssub.s32 %s24, 2
      %s37 = sadd.s32 1, %s32
      %p38 = scmp.ge.s32.totalorder %s37, 2
      %s39 = scalar_select %p38, 0, %s37
      %s40 = sadd.s32 1, %s31
      %s41 = scalar_select %p38, %s40, %s31
      %p42 = scmp.ge.s32.totalorder %s41, 2
      %s43 = scalar_select %p42, 0, %s41
      %s44 = ssub.s32 %s31, %s43
      %s45 = ssub.s32 %s32, %s39
      %s46 = sor.u32 %s44, %s45
      %p47 = scmp.eq.s32.totalorder %s46, 0
      %s49 = sadd.s32 %s48, 1
      %s50 = scalar_select %p47, %s48, %s49
      %p53 = pneg %p47
      %p54 = scmp.eq.s32.totalorder %s24, 3
      %p55 = por %p53, %p54
      %p56 = scmp.ne.s32.totalorder %s48, %s51
      %p57 = scmp.eq.s32.totalorder %s24, 0
      %p58 = por %p56, %p57
      %p59 = scmp.ne.s32.totalorder %s48, %s51
      %p60 = scmp.eq.s32.totalorder %s29, 3
      %p61 = por %p59, %p60
      %p62 = scmp.ne.s32.totalorder %s51, %s52
      %p63 = scmp.eq.s32.totalorder %s29, 0
      %p64 = por %p62, %p63
      %p65 = scmp.ne.s32.totalorder %s51, %s52
      %p66 = scmp.eq.s32.totalorder %s30, 3
      %p67 = por %p65, %p66
      %p69 = scmp.ne.s32.totalorder %s52, %s68
      %p70 = scmp.eq.s32.totalorder %s30, 0
      %p71 = por %p69, %p70
      %s73 = sadd.s32 %s72, 1
      %p76 = scmp.eq.s32.totalorder %s24, 3
      %p77 = scmp.ne.s32.totalorder %s72, %s74
      %p78 = scmp.eq.s32.totalorder %s24, 0
      %p79 = por %p77, %p78
      %p80 = scmp.ne.s32.totalorder %s72, %s74
      %p81 = scmp.eq.s32.totalorder %s29, 3
      %p82 = por %p80, %p81
      %p83 = scmp.ne.s32.totalorder %s74, %s75
      %p84 = scmp.eq.s32.totalorder %s29, 0
      %p85 = por %p83, %p84
      %p86 = scmp.ne.s32.totalorder %s74, %s75
      %p87 = scmp.eq.s32.totalorder %s30, 3
      %p88 = por %p86, %p87
      %p90 = scmp.ne.s32.totalorder %s75, %s89
      %p91 = scmp.eq.s32.totalorder %s30, 0
      %p92 = por %p90, %p91
      %s94 = sadd.s32 %s93, 1
      %p97 = scmp.eq.s32.totalorder %s24, 3
      %p98 = scmp.ne.s32.totalorder %s93, %s95
      %p99 = scmp.eq.s32.totalorder %s24, 0
      %p100 = por %p98, %p99
      %p101 = scmp.ne.s32.totalorder %s93, %s95
      %p102 = scmp.eq.s32.totalorder %s29, 3
      %p103 = por %p101, %p102
      %p104 = scmp.ne.s32.totalorder %s95, %s96
      %p105 = scmp.eq.s32.totalorder %s29, 0
      %p106 = por %p104, %p105
      %p107 = scmp.ne.s32.totalorder %s95, %s96
      %p108 = scmp.eq.s32.totalorder %s30, 3
      %p109 = por %p107, %p108
      %p111 = scmp.ne.s32.totalorder %s96, %s110
      %p112 = scmp.eq.s32.totalorder %s30, 0
      %p113 = por %p111, %p112
      %s115 = sadd.s32 %s114, 1
      %p118 = scmp.eq.s32.totalorder %s24, 3
      %p119 = scmp.ne.s32.totalorder %s114, %s116
      %p120 = scmp.eq.s32.totalorder %s24, 0
      %p121 = por %p119, %p120
      %p122 = scmp.ne.s32.totalorder %s114, %s116
      %p123 = scmp.eq.s32.totalorder %s29, 3
      %p124 = por %p122, %p123
      %p125 = scmp.ne.s32.totalorder %s116, %s117
      %p126 = scmp.eq.s32.totalorder %s29, 0
      %p127 = por %p125, %p126
      %p128 = scmp.ne.s32.totalorder %s116, %s117
      %p129 = scmp.eq.s32.totalorder %s30, 3
      %p130 = por %p128, %p129
      %p132 = scmp.ne.s32.totalorder %s117, %s131
      %p133 = scmp.eq.s32.totalorder %s30, 0
      %p134 = por %p132, %p133
      %s136 = sadd.s32 %s135, 1
      %p139 = scmp.eq.s32.totalorder %s24, 3
      %p140 = scmp.ne.s32.totalorder %s135, %s137
      %p141 = scmp.eq.s32.totalorder %s24, 0
      %p142 = por %p140, %p141
      %p143 = scmp.ne.s32.totalorder %s135, %s137
      %p144 = scmp.eq.s32.totalorder %s29, 3
      %p145 = por %p143, %p144
      %p146 = scmp.ne.s32.totalorder %s137, %s138
      %p147 = scmp.eq.s32.totalorder %s29, 0
      %p148 = por %p146, %p147
      %p149 = scmp.ne.s32.totalorder %s137, %s138
      %p150 = scmp.eq.s32.totalorder %s30, 3
      %p151 = por %p149, %p150
      %p153 = scmp.ne.s32.totalorder %s138, %s152
      %p154 = scmp.eq.s32.totalorder %s30, 0
      %p155 = por %p153, %p154
      %s156 = ssub.s32 %s31, %s43
      %p157 = scmp.eq.s32.totalorder %s156, 0
      %s159 = sadd.s32 %s158, 1
      %s160 = scalar_select %p157, %s158, %s159
      %p163 = pneg %p157
      %p164 = scmp.eq.s32.totalorder %s24, 3
      %p165 = por %p163, %p164
      %p166 = scmp.ne.s32.totalorder %s158, %s161
      %p167 = scmp.eq.s32.totalorder %s24, 0
      %p168 = por %p166, %p167
      %p169 = scmp.ne.s32.totalorder %s158, %s161
      %p170 = scmp.eq.s32.totalorder %s29, 3
      %p171 = por %p169, %p170
      %p172 = scmp.ne.s32.totalorder %s161, %s162
      %p173 = scmp.eq.s32.totalorder %s29, 0
      %p174 = por %p172, %p173
      %p175 = scmp.ne.s32.totalorder %s161, %s162
      %p176 = scmp.eq.s32.totalorder %s30, 3
      %p177 = por %p175, %p176
      %p179 = scmp.ne.s32.totalorder %s162, %s178
      %p180 = scmp.eq.s32.totalorder %s30, 0
      %p181 = por %p179, %p180
      %s182 = ssub.s32 %s31, %s43
      %p183 = scmp.eq.s32.totalorder %s182, 0
      %s185 = sadd.s32 %s184, 1
      %s186 = scalar_select %p183, %s184, %s185
      %p189 = pneg %p183
      %p190 = scmp.eq.s32.totalorder %s24, 3
      %p191 = por %p189, %p190
      %p192 = scmp.ne.s32.totalorder %s184, %s187
      %p193 = scmp.eq.s32.totalorder %s24, 0
      %p194 = por %p192, %p193
      %p195 = scmp.ne.s32.totalorder %s184, %s187
      %p196 = scmp.eq.s32.totalorder %s29, 3
      %p197 = por %p195, %p196
      %p198 = scmp.ne.s32.totalorder %s187, %s188
      %p199 = scmp.eq.s32.totalorder %s29, 0
      %p200 = por %p198, %p199
      %p201 = scmp.ne.s32.totalorder %s187, %s188
      %p202 = scmp.eq.s32.totalorder %s30, 3
      %p203 = por %p201, %p202
      %p205 = scmp.ne.s32.totalorder %s188, %s204
      %p206 = scmp.eq.s32.totalorder %s30, 0
      %p207 = por %p205, %p206
      %p208 = scmp.le.s32.totalorder 1, %s24
      %p209 = scmp.lt.s32.totalorder %s24, 5
      %p210 = pnand %p208, %p209
      %p211 = pneg %p210
      // Predicated region
      $region9: #{tpu_custom_call.1} parent=5 // pred_check
        _
      $region10: #{tpu_custom_call.1} parent=5 // pred_check_branch
        %213 = sbr.rel (%p210) target = $region12
      $region11: #{tpu_custom_call.1} parent=5 // pred_region
        %s214 = ssub.s32 %s24, 1
        // Predicated region
        $region13: #{tpu_custom_call.1} parent=11 // pred_check
          %p215 = pneg %p85
        $region14: #{tpu_custom_call.1} parent=11 // pred_check_branch
          %217 = sbr.rel (%p215) target = $region16
        $region15: #{tpu_custom_call.1} parent=11 // pred_region
          %s219 = ssub.s32 512, 512
          %220 = vsyncadd [#allocation9], %s219
          %s221 = sshll.u32 [#allocation8], 4
          %s222 = int_to_ptr.vmem [resolvable:$true] %s221
          %227 = dma.hbm_to_vmem [thread:$0]  %s1, 512, %s222, [#allocation9], 64, 64, 4
        $region16: #{tpu_custom_call.1} parent=11 // pred_fallthru
          _
        // Predicated region
        $region17: #{tpu_custom_call.1} parent=11 // pred_check
          %p228 = pneg %p106
        $region18: #{tpu_custom_call.1} parent=11 // pred_check_branch
          %230 = sbr.rel (%p228) target = $region20
        $region19: #{tpu_custom_call.1} parent=11 // pred_region
          %s232 = ssub.s32 8192, 8192
          %233 = vsyncadd [#allocation9], %s232
          %s234 = sshll.u32 [#allocation10], 4
          %s235 = int_to_ptr.vmem [resolvable:$true] %s234
          %240 = dma.hbm_to_vmem [thread:$0]  %s2, 8192, %s235, [#allocation9], 512, 512, 32
        $region20: #{tpu_custom_call.1} parent=11 // pred_fallthru
          _
        // Predicated region
        $region21: #{tpu_custom_call.1} parent=11 // pred_check
          %p241 = pneg %p127
        $region22: #{tpu_custom_call.1} parent=11 // pred_check_branch
          %243 = sbr.rel (%p241) target = $region24
        $region23: #{tpu_custom_call.1} parent=11 // pred_region
          %s245 = ssub.s32 1024, 1024
          %246 = vsyncadd [#allocation12], %s245
          %s247 = sshll.u32 [#allocation11], 4
          %s248 = int_to_ptr.vmem [resolvable:$true] %s247
          %253 = dma.hbm_to_vmem [thread:$0]  %s3, 1024, %s248, [#allocation12], 64, 64, 4
        $region24: #{tpu_custom_call.1} parent=11 // pred_fallthru
          _
        // Predicated region
        $region25: #{tpu_custom_call.1} parent=11 // pred_check
          %p254 = pneg %p148
        $region26: #{tpu_custom_call.1} parent=11 // pred_check_branch
          %256 = sbr.rel (%p254) target = $region28
        $region27: #{tpu_custom_call.1} parent=11 // pred_region
          %s258 = ssub.s32 128, 128
          %259 = vsyncadd [#allocation12], %s258
          %s261 = sshll.u32 [#allocation13], 4
          %s262 = int_to_ptr.vmem [resolvable:$true] %s261
          %264 = dma.hbm_to_vmem [thread:$0]  %s4, 128, %s262, [#allocation12]
        $region28: #{tpu_custom_call.1} parent=11 // pred_fallthru
          _
      $region12: #{tpu_custom_call.1} parent=5 // pred_fallthru
        _
      %p265 = scmp.lt.s32.totalorder %s24, 4
      // Predicated region
      $region29: #{tpu_custom_call.1} parent=5 // pred_check
        %p266 = pneg %p265
      $region30: #{tpu_custom_call.1} parent=5 // pred_check_branch
        %268 = sbr.rel (%p266) target = $region32
      $region31: #{tpu_custom_call.1} parent=5 // pred_region
        // Predicated region
        $region33: #{tpu_custom_call.1} parent=31 // pred_check
          %p269 = pneg %p58
        $region34: #{tpu_custom_call.1} parent=31 // pred_check_branch
          %271 = sbr.rel (%p269) target = $region36
        $region35: #{tpu_custom_call.1} parent=31 // pred_region
          %s272 = sand.u32 %s48, 1
          %s273 = scalar_lea.sflag [#allocation6], %s272
          %s274 = sand.u32 %s48, 1
          %s275 = smul.addr %s274, 32
          %s276 = scalar_lea.vmem [#allocation5], %s275
          %s277 = smul.u32 4, %s31
          %s278 = smul.u32 2, %s32
          %s280 = ssub.s32 512, 512
          %281 = vsyncadd %s273, %s280
          %s282 = smul.addr %s277, 4
          %s283 = sadd.s32 %s278, %s282
          %s284 = smul.addr %s283, 64
          %s285 = scalar_lea.hbm %s0, %s284
          %s286 = sshll.u32 %s276, 4
          %s287 = int_to_ptr.vmem [resolvable:$true] %s286
          %292 = dma.hbm_to_vmem [thread:$0]  %s285, 512, %s287, %s273, 256, 128, 8
        $region36: #{tpu_custom_call.1} parent=31 // pred_fallthru
          _
      $region32: #{tpu_custom_call.1} parent=5 // pred_fallthru
        _
      %p293 = scmp.le.s32.totalorder 1, %s24
      %p294 = scmp.lt.s32.totalorder %s24, 5
      %p295 = pnand %p293, %p294
      %p296 = pneg %p295
      // Predicated region
      $region37: #{tpu_custom_call.1} parent=5 // pred_check
        _
      $region38: #{tpu_custom_call.1} parent=5 // pred_check_branch
        %298 = sbr.rel (%p295) target = $region40
      $region39: #{tpu_custom_call.1} parent=5 // pred_region
        %s299 = ssub.s32 %s24, 1
        %s300 = sand.u32 %s51, 1
        %s301 = scalar_lea.sflag [#allocation6], %s300
        %s302 = sand.u32 %s51, 1
        %s303 = smul.addr %s302, 32
        %s304 = scalar_lea.vmem [#allocation5], %s303
        // Predicated region
        $region41: #{tpu_custom_call.1} parent=39 // pred_check
          %p305 = pneg %p64
        $region42: #{tpu_custom_call.1} parent=39 // pred_check_branch
          %307 = sbr.rel (%p305) target = $region44
        $region43: #{tpu_custom_call.1} parent=39 // pred_region
          %308 = dma.done %s301, 512
        $region44: #{tpu_custom_call.1} parent=39 // pred_fallthru
          _
        // Predicated region
        $region45: #{tpu_custom_call.1} parent=39 // pred_check
          %p309 = pneg %p85
        $region46: #{tpu_custom_call.1} parent=39 // pred_check_branch
          %311 = sbr.rel (%p309) target = $region48
        $region47: #{tpu_custom_call.1} parent=39 // pred_region
          %312 = dma.done [#allocation9], 512
        $region48: #{tpu_custom_call.1} parent=39 // pred_fallthru
          _
        // Predicated region
        $region49: #{tpu_custom_call.1} parent=39 // pred_check
          %p313 = pneg %p106
        $region50: #{tpu_custom_call.1} parent=39 // pred_check_branch
          %315 = sbr.rel (%p313) target = $region52
        $region51: #{tpu_custom_call.1} parent=39 // pred_region
          %316 = dma.done [#allocation9], 8192
        $region52: #{tpu_custom_call.1} parent=39 // pred_fallthru
          _
        // Predicated region
        $region53: #{tpu_custom_call.1} parent=39 // pred_check
          %p317 = pneg %p127
        $region54: #{tpu_custom_call.1} parent=39 // pred_check_branch
          %319 = sbr.rel (%p317) target = $region56
        $region55: #{tpu_custom_call.1} parent=39 // pred_region
          %320 = dma.done [#allocation12], 1024
        $region56: #{tpu_custom_call.1} parent=39 // pred_fallthru
          _
        // Predicated region
        $region57: #{tpu_custom_call.1} parent=39 // pred_check
          %p321 = pneg %p148
        $region58: #{tpu_custom_call.1} parent=39 // pred_check_branch
          %323 = sbr.rel (%p321) target = $region60
        $region59: #{tpu_custom_call.1} parent=39 // pred_region
          %324 = dma.done [#allocation12], 128
        $region60: #{tpu_custom_call.1} parent=39 // pred_fallthru
          _
        %s325 = sand.u32 %s51, 1
        %s326 = scalar_lea.sflag [#allocation6], %s325
        %s327 = sand.u32 %s51, 1
        %s328 = smul.addr %s327, 32
        %s329 = scalar_lea.vmem [#allocation5], %s328
        %p330 = pneg %p64
        %p331 = pneg %p61
        %p332 = pneg %p85
        %p333 = pneg %p82
        %p334 = pneg %p106
        %p335 = pneg %p103
        %p336 = pneg %p127
        %p337 = pneg %p124
        %p338 = pneg %p148
        %p339 = pneg %p145
        %p340 = pneg %p174
        %p341 = pneg %p171
        %s342 = sand.u32 %s161, 1
        %s343 = scalar_lea.sflag [#allocation7], %s342
        %s344 = sand.u32 %s161, 1
        %s345 = smul.addr %s344, 32
        %s346 = scalar_lea.vmem [#allocation14], %s345
        %p347 = pneg %p200
        %p348 = pneg %p197
        %s349 = sand.u32 %s187, 1
        %s350 = scalar_lea.sflag [#allocation16], %s349
        %s351 = sand.u32 %s187, 1
        %s352 = smul.addr %s351, 8
        %s353 = scalar_lea.vmem [#allocation15], %s352
        %s354 = smul.u32 4, %s33
        %s355 = smul.u32 2, %s34
        %s356 = smul.u32 4, %s33
        %p358 = scmp.eq.s32.totalorder %s34, 0
        // Predicated region
        $region61: #{tpu_custom_call.1} parent=39 // pred_check
          %p359 = pneg %p358
        $region62: #{tpu_custom_call.1} parent=39 // pred_check_branch
          %361 = sbr.rel (%p359) target = $region64
        $region63: #{tpu_custom_call.1} parent=39 // pred_region
          %362 = vst [vmem:[#allocation2] sm:$0xff] 0.0
          %363 = vst [vmem:[#allocation2 + $0x8] sm:$0xff] 0.0
          %364 = vst [vmem:[#allocation2 + $0x10] sm:$0xff] 0.0
          %365 = vst [vmem:[#allocation2 + $0x18] sm:$0xff] 0.0
          %s366 = smul.u32 %s33, 32
          %s367 = sshra.s32 %s366, 3
          %s368 = sand.u32 %s366, 7
          %s369 = smul.addr %s367, 4
          %s370 = scalar_lea.vmem [#allocation8], %s369
          %v371 = vld [vmem:[%s370] sm:$0xf]
          %v372 = vld [vmem:[%s370 + $0x4] sm:$0xf]
          %v373 = vld [vmem:[%s370 + $0x8] sm:$0xf]
          %v374 = vld [vmem:[%s370 + $0xc] sm:$0xf]
          %v375 = vld [vmem:[#allocation11] sm:$0xf]
          %v376 = vld [vmem:[#allocation11 + $0x4] sm:$0xf]
          %v377 = vld [vmem:[#allocation11 + $0x8] sm:$0xf]
          %v378 = vld [vmem:[#allocation11 + $0xc] sm:$0xf]
          %v379 = vld [vmem:[#allocation11 + $0x10] sm:$0xf]
          %v380 = vld [vmem:[#allocation11 + $0x14] sm:$0xf]
          %v381 = vld [vmem:[#allocation11 + $0x18] sm:$0xf]
          %v382 = vld [vmem:[#allocation11 + $0x1c] sm:$0xf]
          %v383 = vld [vmem:[#allocation11 + $0x20] sm:$0xf]
          %v384 = vld [vmem:[#allocation11 + $0x24] sm:$0xf]
          %v385 = vld [vmem:[#allocation11 + $0x28] sm:$0xf]
          %v386 = vld [vmem:[#allocation11 + $0x2c] sm:$0xf]
          %v387 = vld [vmem:[#allocation11 + $0x30] sm:$0xf]
          %v388 = vld [vmem:[#allocation11 + $0x34] sm:$0xf]
          %v389 = vld [vmem:[#allocation11 + $0x38] sm:$0xf]
          %v390 = vld [vmem:[#allocation11 + $0x3c] sm:$0xf]
          %v391 = vld [vmem:[#allocation13 + $0x1] sm:$0x1]
          %v392 = vlaneseq
          %v393 = vshrl.u32 %v392, 7
          %v394 = vsub.s32 0, %v393
          %v395 = vrot.slane %v391, %v394
          %v400 = vunpack.c.l.b16 %v371
          %v401 = vunpack.c.l.b16 %v372
          %v402 = vunpack.c.l.b16 %v373
          %v403 = vunpack.c.l.b16 %v374
          %v404 = vpack.c.b16 %v401, %v400
          %v405 = vpack.c.b16 %v403, %v402
          %v424 = vunpack.c.l.b16 %v375
          %v425 = vunpack.c.l.b16 %v376
          %v426 = vunpack.c.l.b16 %v377
          %v427 = vunpack.c.l.b16 %v378
          %v428 = vunpack.c.l.b16 %v379
          %v429 = vunpack.c.l.b16 %v380
          %v430 = vunpack.c.l.b16 %v381
          %v431 = vunpack.c.l.b16 %v382
          %v432 = vunpack.c.l.b16 %v383
          %v433 = vunpack.c.l.b16 %v384
          %v434 = vunpack.c.l.b16 %v385
          %v435 = vunpack.c.l.b16 %v386
          %v436 = vunpack.c.l.b16 %v387
          %v437 = vunpack.c.l.b16 %v388
          %v438 = vunpack.c.l.b16 %v389
          %v439 = vunpack.c.l.b16 %v390
          %v440 = vpack.c.b16 %v425, %v424
          %v441 = vpack.c.b16 %v427, %v426
          %v442 = vpack.c.b16 %v429, %v428
          %v443 = vpack.c.b16 %v431, %v430
          %v444 = vpack.c.b16 %v433, %v432
          %v445 = vpack.c.b16 %v435, %v434
          %v446 = vpack.c.b16 %v437, %v436
          %v447 = vpack.c.b16 %v439, %v438
          %456 = vmatprep.subr.bf16.mxu0 0
          %457 = vmatpush1.bf16.msra.mxu0 %v447
          %458 = vmatprep.subr.bf16.mxu0 0
          %459 = vmatpush1.bf16.msra.mxu0 %v446
          %460 = vmatprep.subr.bf16.mxu0 0
          %461 = vmatpush1.bf16.msra.mxu0 %v445
          %462 = vmatprep.subr.bf16.mxu0 0
          %463 = vmatpush1.bf16.msra.mxu0 %v444
          %464 = vmatprep.subr.bf16.mxu0 0
          %465 = vmatpush1.bf16.msra.mxu0 %v443
          %466 = vmatprep.subr.bf16.mxu0 0
          %467 = vmatpush1.bf16.msra.mxu0 %v442
          %468 = vmatprep.subr.bf16.mxu0 0
          %469 = vmatpush1.bf16.msra.mxu0 %v441
          %470 = vmatprep.subr.bf16.mxu0 0
          %471 = vmatpush1.bf16.msra.mxu0 %v440
          %472 = vmatprep.subr.bf16.mxu0 0
          %473 = vmatpush2.bf16.msra.mxu0 0
          %474 = vmatprep.subr.bf16.mxu0 0
          %475 = vmatpush2.bf16.msra.mxu0 0
          %476 = vmatprep.subr.bf16.mxu0 0
          %477 = vmatpush2.bf16.msra.mxu0 0
          %478 = vmatprep.subr.bf16.mxu0 0
          %479 = vmatpush2.bf16.msra.mxu0 0
          %480 = vmatprep.subr.bf16.mxu0 0
          %481 = vmatpush2.bf16.msra.mxu0 0
          %482 = vmatprep.subr.bf16.mxu0 0
          %483 = vmatpush2.bf16.msra.mxu0 0
          %484 = vmatprep.subr.bf16.mxu0 0
          %485 = vmatpush2.bf16.msra.mxu0 0
          %486 = vmatprep.subr.bf16.mxu0 0
          %487 = vmatpush2.bf16.msra.mxu0 0
          %488 = vmatprep.mubr.bf16.mxu0 0
          %489 = vmatmul.mubr.bf16.gmra.mxu0 %v404
          %v490 = vpop.f32.mrf.mxu0
          %v491 = vadd.f32 %v395, %v490
          %v492 = vpop.f32.mrf.mxu0
          %v493 = vpop.f32.mrf.mxu0
          %v494 = vadd.f32 %v395, %v493
          %v495 = vpop.f32.mrf.mxu0
          %496 = vmatprep.mubr.bf16.mxu0 0
          %497 = vmatmul.mubr.bf16.gmra.mxu0 %v405
          %v498 = vpop.f32.mrf.mxu0
          %v499 = vadd.f32 %v395, %v498
          %v500 = vpop.f32.mrf.mxu0
          %v501 = vpop.f32.mrf.mxu0
          %v502 = vadd.f32 %v395, %v501
          %v503 = vpop.f32.mrf.mxu0
          %504 = vdwg.mxu0
          %v505 = vmax.f32 %v491, 0.0
          %v506 = vmax.f32 %v494, 0.0
          %v507 = vmax.f32 %v499, 0.0
          %v508 = vmax.f32 %v502, 0.0
          %509 = vst [vmem:[#allocation3] sm:$0xff] %v505
          %510 = vst [vmem:[#allocation3 + $0x8] sm:$0xff] %v506
          %511 = vst [vmem:[#allocation3 + $0x10] sm:$0xff] %v507
          %512 = vst [vmem:[#allocation3 + $0x18] sm:$0xff] %v508
        $region64: #{tpu_custom_call.1} parent=39 // pred_fallthru
          _
        %s513 = smul.u32 %s34, 32
        %s514 = sshra.s32 %s513, 3
        %s515 = sand.u32 %s513, 7
        %s516 = smul.addr %s514, 4
        %s517 = scalar_lea.vmem [#allocation8], %s516
        %v518 = vld [vmem:[%s517] sm:$0xf]
        %v519 = vld [vmem:[%s517 + $0x4] sm:$0xf]
        %v520 = vld [vmem:[%s517 + $0x8] sm:$0xf]
        %v521 = vld [vmem:[%s517 + $0xc] sm:$0xf]
        %v522 = vld [vmem:[#allocation10] sm:$0xf]
        %v523 = vld [vmem:[#allocation10 + $0x20] sm:$0xf]
        %v524 = vld [vmem:[#allocation10 + $0x40] sm:$0xf]
        %v525 = vld [vmem:[#allocation10 + $0x60] sm:$0xf]
        %v526 = vld [vmem:[#allocation10 + $0x80] sm:$0xf]
        %v527 = vld [vmem:[#allocation10 + $0xa0] sm:$0xf]
        %v528 = vld [vmem:[#allocation10 + $0xc0] sm:$0xf]
        %v529 = vld [vmem:[#allocation10 + $0xe0] sm:$0xf]
        %v530 = vld [vmem:[#allocation10 + $0x100] sm:$0xf]
        %v531 = vld [vmem:[#allocation10 + $0x120] sm:$0xf]
        %v532 = vld [vmem:[#allocation10 + $0x140] sm:$0xf]
        %v533 = vld [vmem:[#allocation10 + $0x160] sm:$0xf]
        %v534 = vld [vmem:[#allocation10 + $0x180] sm:$0xf]
        %v535 = vld [vmem:[#allocation10 + $0x1a0] sm:$0xf]
        %v536 = vld [vmem:[#allocation10 + $0x1c0] sm:$0xf]
        %v537 = vld [vmem:[#allocation10 + $0x1e0] sm:$0xf]
        %v542 = vunpack.c.l.b16 %v518
        %v543 = vunpack.c.l.b16 %v519
        %v544 = vunpack.c.l.b16 %v520
        %v545 = vunpack.c.l.b16 %v521
        %v546 = vpack.c.b16 %v543, %v542
        %v547 = vpack.c.b16 %v545, %v544
        %v566 = vunpack.c.l.b16 %v522
        %v567 = vunpack.c.l.b16 %v523
        %v568 = vunpack.c.l.b16 %v524
        %v569 = vunpack.c.l.b16 %v525
        %v570 = vunpack.c.l.b16 %v526
        %v571 = vunpack.c.l.b16 %v527
        %v572 = vunpack.c.l.b16 %v528
        %v573 = vunpack.c.l.b16 %v529
        %v574 = vunpack.c.l.b16 %v530
        %v575 = vunpack.c.l.b16 %v531
        %v576 = vunpack.c.l.b16 %v532
        %v577 = vunpack.c.l.b16 %v533
        %v578 = vunpack.c.l.b16 %v534
        %v579 = vunpack.c.l.b16 %v535
        %v580 = vunpack.c.l.b16 %v536
        %v581 = vunpack.c.l.b16 %v537
        %v582 = vpack.c.b16 %v567, %v566
        %v583 = vpack.c.b16 %v569, %v568
        %v584 = vpack.c.b16 %v571, %v570
        %v585 = vpack.c.b16 %v573, %v572
        %v586 = vpack.c.b16 %v575, %v574
        %v587 = vpack.c.b16 %v577, %v576
        %v588 = vpack.c.b16 %v579, %v578
        %v589 = vpack.c.b16 %v581, %v580
        %598 = vmatprep.subr.bf16.mxu0 0
        %599 = vmatpush1.bf16.msra.mxu0 %v589
        %600 = vmatprep.subr.bf16.mxu0 0
        %601 = vmatpush1.bf16.msra.mxu0 %v588
        %602 = vmatprep.subr.bf16.mxu0 0
        %603 = vmatpush1.bf16.msra.mxu0 %v587
        %604 = vmatprep.subr.bf16.mxu0 0
        %605 = vmatpush1.bf16.msra.mxu0 %v586
        %606 = vmatprep.subr.bf16.mxu0 0
        %607 = vmatpush1.bf16.msra.mxu0 %v585
        %608 = vmatprep.subr.bf16.mxu0 0
        %609 = vmatpush1.bf16.msra.mxu0 %v584
        %610 = vmatprep.subr.bf16.mxu0 0
        %611 = vmatpush1.bf16.msra.mxu0 %v583
        %612 = vmatprep.subr.bf16.mxu0 0
        %613 = vmatpush1.bf16.msra.mxu0 %v582
        %614 = vmatprep.subr.bf16.mxu0 0
        %615 = vmatpush2.bf16.msra.mxu0 0
        %616 = vmatprep.subr.bf16.mxu0 0
        %617 = vmatpush2.bf16.msra.mxu0 0
        %618 = vmatprep.subr.bf16.mxu0 0
        %619 = vmatpush2.bf16.msra.mxu0 0
        %620 = vmatprep.subr.bf16.mxu0 0
        %621 = vmatpush2.bf16.msra.mxu0 0
        %622 = vmatprep.subr.bf16.mxu0 0
        %623 = vmatpush2.bf16.msra.mxu0 0
        %624 = vmatprep.subr.bf16.mxu0 0
        %625 = vmatpush2.bf16.msra.mxu0 0
        %626 = vmatprep.subr.bf16.mxu0 0
        %627 = vmatpush2.bf16.msra.mxu0 0
        %628 = vmatprep.subr.bf16.mxu0 0
        %629 = vmatpush2.bf16.msra.mxu0 0
        %630 = vmatprep.mubr.bf16.mxu0 0
        %631 = vmatmul.mubr.bf16.gmra.mxu0 %v546
        %v632 = vpop.f32.mrf.mxu0
        %v633 = vadd.f32 0.0, %v632
        %v634 = vpop.f32.mrf.mxu0
        %v635 = vpop.f32.mrf.mxu0
        %v636 = vadd.f32 0.0, %v635
        %v637 = vpop.f32.mrf.mxu0
        %638 = vmatprep.mubr.bf16.mxu0 0
        %639 = vmatmul.mubr.bf16.gmra.mxu0 %v547
        %v640 = vpop.f32.mrf.mxu0
        %v641 = vadd.f32 0.0, %v640
        %v642 = vpop.f32.mrf.mxu0
        %v643 = vpop.f32.mrf.mxu0
        %v644 = vadd.f32 0.0, %v643
        %v645 = vpop.f32.mrf.mxu0
        %646 = vdwg.mxu0
        %v647 = vpack.c.bf16 %v636, %v633
        %v648 = vpack.c.bf16 %v644, %v641
        %v651 = vunpack.c.l.b16 %v647
        %v652 = vunpack.c.h.b16 %v647
        %v653 = vunpack.c.l.b16 %v648
        %v654 = vunpack.c.h.b16 %v648
        %v655 = vpack.c.b16 %v651, %v651
        %v656 = vpack.c.b16 %v652, %v652
        %v657 = vpack.c.b16 %v653, %v653
        %v658 = vpack.c.b16 %v654, %v654
        %663 = vst [vmem:[#allocation4] sm:$0xf] %v655
        %664 = vst [vmem:[#allocation4 + $0x4] sm:$0xf] %v656
        %665 = vst [vmem:[#allocation4 + $0x8] sm:$0xf] %v657
        %666 = vst [vmem:[#allocation4 + $0xc] sm:$0xf] %v658
        %v667 = vld [vmem:[#allocation10 + $0x4] sm:$0xf]
        %v668 = vld [vmem:[#allocation10 + $0x24] sm:$0xf]
        %v669 = vld [vmem:[#allocation10 + $0x44] sm:$0xf]
        %v670 = vld [vmem:[#allocation10 + $0x64] sm:$0xf]
        %v671 = vld [vmem:[#allocation10 + $0x84] sm:$0xf]
        %v672 = vld [vmem:[#allocation10 + $0xa4] sm:$0xf]
        %v673 = vld [vmem:[#allocation10 + $0xc4] sm:$0xf]
        %v674 = vld [vmem:[#allocation10 + $0xe4] sm:$0xf]
        %v675 = vld [vmem:[#allocation10 + $0x104] sm:$0xf]
        %v676 = vld [vmem:[#allocation10 + $0x124] sm:$0xf]
        %v677 = vld [vmem:[#allocation10 + $0x144] sm:$0xf]
        %v678 = vld [vmem:[#allocation10 + $0x164] sm:$0xf]
        %v679 = vld [vmem:[#allocation10 + $0x184] sm:$0xf]
        %v680 = vld [vmem:[#allocation10 + $0x1a4] sm:$0xf]
        %v681 = vld [vmem:[#allocation10 + $0x1c4] sm:$0xf]
        %v682 = vld [vmem:[#allocation10 + $0x1e4] sm:$0xf]
        %v699 = vunpack.c.l.b16 %v667
        %v700 = vunpack.c.l.b16 %v668
        %v701 = vunpack.c.l.b16 %v669
        %v702 = vunpack.c.l.b16 %v670
        %v703 = vunpack.c.l.b16 %v671
        %v704 = vunpack.c.l.b16 %v672
        %v705 = vunpack.c.l.b16 %v673
        %v706 = vunpack.c.l.b16 %v674
        %v707 = vunpack.c.l.b16 %v675
        %v708 = vunpack.c.l.b16 %v676
        %v709 = vunpack.c.l.b16 %v677
        %v710 = vunpack.c.l.b16 %v678
        %v711 = vunpack.c.l.b16 %v679
        %v712 = vunpack.c.l.b16 %v680
        %v713 = vunpack.c.l.b16 %v681
        %v714 = vunpack.c.l.b16 %v682
        %v715 = vpack.c.b16 %v700, %v699
        %v716 = vpack.c.b16 %v702, %v701
        %v717 = vpack.c.b16 %v704, %v703
        %v718 = vpack.c.b16 %v706, %v705
        %v719 = vpack.c.b16 %v708, %v707
        %v720 = vpack.c.b16 %v710, %v709
        %v721 = vpack.c.b16 %v712, %v711
        %v722 = vpack.c.b16 %v714, %v713
        %731 = vmatprep.subr.bf16.mxu0 0
        %732 = vmatpush1.bf16.msra.mxu0 %v722
        %733 = vmatprep.subr.bf16.mxu0 0
        %734 = vmatpush1.bf16.msra.mxu0 %v721
        %735 = vmatprep.subr.bf16.mxu0 0
        %736 = vmatpush1.bf16.msra.mxu0 %v720
        %737 = vmatprep.subr.bf16.mxu0 0
        %738 = vmatpush1.bf16.msra.mxu0 %v719
        %739 = vmatprep.subr.bf16.mxu0 0
        %740 = vmatpush1.bf16.msra.mxu0 %v718
        %741 = vmatprep.subr.bf16.mxu0 0
        %742 = vmatpush1.bf16.msra.mxu0 %v717
        %743 = vmatprep.subr.bf16.mxu0 0
        %744 = vmatpush1.bf16.msra.mxu0 %v716
        %745 = vmatprep.subr.bf16.mxu0 0
        %746 = vmatpush1.bf16.msra.mxu0 %v715
        %747 = vmatprep.subr.bf16.mxu0 0
        %748 = vmatpush2.bf16.msra.mxu0 0
        %749 = vmatprep.subr.bf16.mxu0 0
        %750 = vmatpush2.bf16.msra.mxu0 0
        %751 = vmatprep.subr.bf16.mxu0 0
        %752 = vmatpush2.bf16.msra.mxu0 0
        %753 = vmatprep.subr.bf16.mxu0 0
        %754 = vmatpush2.bf16.msra.mxu0 0
        %755 = vmatprep.subr.bf16.mxu0 0
        %756 = vmatpush2.bf16.msra.mxu0 0
        %757 = vmatprep.subr.bf16.mxu0 0
        %758 = vmatpush2.bf16.msra.mxu0 0
        %759 = vmatprep.subr.bf16.mxu0 0
        %760 = vmatpush2.bf16.msra.mxu0 0
        %761 = vmatprep.subr.bf16.mxu0 0
        %762 = vmatpush2.bf16.msra.mxu0 0
        %763 = vmatprep.mubr.bf16.mxu0 0
        %764 = vmatmul.mubr.bf16.gmra.mxu0 %v546
        %v765 = vpop.f32.mrf.mxu0
        %v766 = vadd.f32 0.0, %v765
        %v767 = vpop.f32.mrf.mxu0
        %v768 = vpop.f32.mrf.mxu0
        %v769 = vadd.f32 0.0, %v768
        %v770 = vpop.f32.mrf.mxu0
        %771 = vmatprep.mubr.bf16.mxu0 0
        %772 = vmatmul.mubr.bf16.gmra.mxu0 %v547
        %v773 = vpop.f32.mrf.mxu0
        %v774 = vadd.f32 0.0, %v773
        %v775 = vpop.f32.mrf.mxu0
        %v776 = vpop.f32.mrf.mxu0
        %v777 = vadd.f32 0.0, %v776
        %v778 = vpop.f32.mrf.mxu0
        %779 = vdwg.mxu0
        %v780 = vpack.c.bf16 %v769, %v766
        %v781 = vpack.c.bf16 %v777, %v774
        %v784 = vunpack.c.l.b16 %v780
        %v785 = vunpack.c.h.b16 %v780
        %v786 = vunpack.c.l.b16 %v781
        %v787 = vunpack.c.h.b16 %v781
        %v788 = vpack.c.b16 %v784, %v784
        %v789 = vpack.c.b16 %v785, %v785
        %v790 = vpack.c.b16 %v786, %v786
        %v791 = vpack.c.b16 %v787, %v787
        %796 = vst [vmem:[#allocation4 + $0x10] sm:$0xf] %v788
        %797 = vst [vmem:[#allocation4 + $0x14] sm:$0xf] %v789
        %798 = vst [vmem:[#allocation4 + $0x18] sm:$0xf] %v790
        %799 = vst [vmem:[#allocation4 + $0x1c] sm:$0xf] %v791
        %v800 = vld [vmem:[#allocation10 + $0x8] sm:$0xf]
        %v801 = vld [vmem:[#allocation10 + $0x28] sm:$0xf]
        %v802 = vld [vmem:[#allocation10 + $0x48] sm:$0xf]
        %v803 = vld [vmem:[#allocation10 + $0x68] sm:$0xf]
        %v804 = vld [vmem:[#allocation10 + $0x88] sm:$0xf]
        %v805 = vld [vmem:[#allocation10 + $0xa8] sm:$0xf]
        %v806 = vld [vmem:[#allocation10 + $0xc8] sm:$0xf]
        %v807 = vld [vmem:[#allocation10 + $0xe8] sm:$0xf]
        %v808 = vld [vmem:[#allocation10 + $0x108] sm:$0xf]
        %v809 = vld [vmem:[#allocation10 + $0x128] sm:$0xf]
        %v810 = vld [vmem:[#allocation10 + $0x148] sm:$0xf]
        %v811 = vld [vmem:[#allocation10 + $0x168] sm:$0xf]
        %v812 = vld [vmem:[#allocation10 + $0x188] sm:$0xf]
        %v813 = vld [vmem:[#allocation10 + $0x1a8] sm:$0xf]
        %v814 = vld [vmem:[#allocation10 + $0x1c8] sm:$0xf]
        %v815 = vld [vmem:[#allocation10 + $0x1e8] sm:$0xf]
        %v832 = vunpack.c.l.b16 %v800
        %v833 = vunpack.c.l.b16 %v801
        %v834 = vunpack.c.l.b16 %v802
        %v835 = vunpack.c.l.b16 %v803
        %v836 = vunpack.c.l.b16 %v804
        %v837 = vunpack.c.l.b16 %v805
        %v838 = vunpack.c.l.b16 %v806
        %v839 = vunpack.c.l.b16 %v807
        %v840 = vunpack.c.l.b16 %v808
        %v841 = vunpack.c.l.b16 %v809
        %v842 = vunpack.c.l.b16 %v810
        %v843 = vunpack.c.l.b16 %v811
        %v844 = vunpack.c.l.b16 %v812
        %v845 = vunpack.c.l.b16 %v813
        %v846 = vunpack.c.l.b16 %v814
        %v847 = vunpack.c.l.b16 %v815
        %v848 = vpack.c.b16 %v833, %v832
        %v849 = vpack.c.b16 %v835, %v834
        %v850 = vpack.c.b16 %v837, %v836
        %v851 = vpack.c.b16 %v839, %v838
        %v852 = vpack.c.b16 %v841, %v840
        %v853 = vpack.c.b16 %v843, %v842
        %v854 = vpack.c.b16 %v845, %v844
        %v855 = vpack.c.b16 %v847, %v846
        %864 = vmatprep.subr.bf16.mxu0 0
        %865 = vmatpush1.bf16.msra.mxu0 %v855
        %866 = vmatprep.subr.bf16.mxu0 0
        %867 = vmatpush1.bf16.msra.mxu0 %v854
        %868 = vmatprep.subr.bf16.mxu0 0
        %869 = vmatpush1.bf16.msra.mxu0 %v853
        %870 = vmatprep.subr.bf16.mxu0 0
        %871 = vmatpush1.bf16.msra.mxu0 %v852
        %872 = vmatprep.subr.bf16.mxu0 0
        %873 = vmatpush1.bf16.msra.mxu0 %v851
        %874 = vmatprep.subr.bf16.mxu0 0
        %875 = vmatpush1.bf16.msra.mxu0 %v850
        %876 = vmatprep.subr.bf16.mxu0 0
        %877 = vmatpush1.bf16.msra.mxu0 %v849
        %878 = vmatprep.subr.bf16.mxu0 0
        %879 = vmatpush1.bf16.msra.mxu0 %v848
        %880 = vmatprep.subr.bf16.mxu0 0
        %881 = vmatpush2.bf16.msra.mxu0 0
        %882 = vmatprep.subr.bf16.mxu0 0
        %883 = vmatpush2.bf16.msra.mxu0 0
        %884 = vmatprep.subr.bf16.mxu0 0
        %885 = vmatpush2.bf16.msra.mxu0 0
        %886 = vmatprep.subr.bf16.mxu0 0
        %887 = vmatpush2.bf16.msra.mxu0 0
        %888 = vmatprep.subr.bf16.mxu0 0
        %889 = vmatpush2.bf16.msra.mxu0 0
        %890 = vmatprep.subr.bf16.mxu0 0
        %891 = vmatpush2.bf16.msra.mxu0 0
        %892 = vmatprep.subr.bf16.mxu0 0
        %893 = vmatpush2.bf16.msra.mxu0 0
        %894 = vmatprep.subr.bf16.mxu0 0
        %895 = vmatpush2.bf16.msra.mxu0 0
        %896 = vmatprep.mubr.bf16.mxu0 0
        %897 = vmatmul.mubr.bf16.gmra.mxu0 %v546
        %v898 = vpop.f32.mrf.mxu0
        %v899 = vadd.f32 0.0, %v898
        %v900 = vpop.f32.mrf.mxu0
        %v901 = vpop.f32.mrf.mxu0
        %v902 = vadd.f32 0.0, %v901
        %v903 = vpop.f32.mrf.mxu0
        %904 = vmatprep.mubr.bf16.mxu0 0
        %905 = vmatmul.mubr.bf16.gmra.mxu0 %v547
        %v906 = vpop.f32.mrf.mxu0
        %v907 = vadd.f32 0.0, %v906
        %v908 = vpop.f32.mrf.mxu0
        %v909 = vpop.f32.mrf.mxu0
        %v910 = vadd.f32 0.0, %v909
        %v911 = vpop.f32.mrf.mxu0
        %912 = vdwg.mxu0
        %v913 = vpack.c.bf16 %v902, %v899
        %v914 = vpack.c.bf16 %v910, %v907
        %v917 = vunpack.c.l.b16 %v913
        %v918 = vunpack.c.h.b16 %v913
        %v919 = vunpack.c.l.b16 %v914
        %v920 = vunpack.c.h.b16 %v914
        %v921 = vpack.c.b16 %v917, %v917
        %v922 = vpack.c.b16 %v918, %v918
        %v923 = vpack.c.b16 %v919, %v919
        %v924 = vpack.c.b16 %v920, %v920
        %929 = vst [vmem:[#allocation4 + $0x20] sm:$0xf] %v921
        %930 = vst [vmem:[#allocation4 + $0x24] sm:$0xf] %v922
        %931 = vst [vmem:[#allocation4 + $0x28] sm:$0xf] %v923
        %932 = vst [vmem:[#allocation4 + $0x2c] sm:$0xf] %v924
        %v933 = vld [vmem:[#allocation10 + $0xc] sm:$0xf]
        %v934 = vld [vmem:[#allocation10 + $0x2c] sm:$0xf]
        %v935 = vld [vmem:[#allocation10 + $0x4c] sm:$0xf]
        %v936 = vld [vmem:[#allocation10 + $0x6c] sm:$0xf]
        %v937 = vld [vmem:[#allocation10 + $0x8c] sm:$0xf]
        %v938 = vld [vmem:[#allocation10 + $0xac] sm:$0xf]
        %v939 = vld [vmem:[#allocation10 + $0xcc] sm:$0xf]
        %v940 = vld [vmem:[#allocation10 + $0xec] sm:$0xf]
        %v941 = vld [vmem:[#allocation10 + $0x10c] sm:$0xf]
        %v942 = vld [vmem:[#allocation10 + $0x12c] sm:$0xf]
        %v943 = vld [vmem:[#allocation10 + $0x14c] sm:$0xf]
        %v944 = vld [vmem:[#allocation10 + $0x16c] sm:$0xf]
        %v945 = vld [vmem:[#allocation10 + $0x18c] sm:$0xf]
        %v946 = vld [vmem:[#allocation10 + $0x1ac] sm:$0xf]
        %v947 = vld [vmem:[#allocation10 + $0x1cc] sm:$0xf]
        %v948 = vld [vmem:[#allocation10 + $0x1ec] sm:$0xf]
        %v965 = vunpack.c.l.b16 %v933
        %v966 = vunpack.c.l.b16 %v934
        %v967 = vunpack.c.l.b16 %v935
        %v968 = vunpack.c.l.b16 %v936
        %v969 = vunpack.c.l.b16 %v937
        %v970 = vunpack.c.l.b16 %v938
        %v971 = vunpack.c.l.b16 %v939
        %v972 = vunpack.c.l.b16 %v940
        %v973 = vunpack.c.l.b16 %v941
        %v974 = vunpack.c.l.b16 %v942
        %v975 = vunpack.c.l.b16 %v943
        %v976 = vunpack.c.l.b16 %v944
        %v977 = vunpack.c.l.b16 %v945
        %v978 = vunpack.c.l.b16 %v946
        %v979 = vunpack.c.l.b16 %v947
        %v980 = vunpack.c.l.b16 %v948
        %v981 = vpack.c.b16 %v966, %v965
        %v982 = vpack.c.b16 %v968, %v967
        %v983 = vpack.c.b16 %v970, %v969
        %v984 = vpack.c.b16 %v972, %v971
        %v985 = vpack.c.b16 %v974, %v973
        %v986 = vpack.c.b16 %v976, %v975
        %v987 = vpack.c.b16 %v978, %v977
        %v988 = vpack.c.b16 %v980, %v979
        %997 = vmatprep.subr.bf16.mxu0 0
        %998 = vmatpush1.bf16.msra.mxu0 %v988
        %999 = vmatprep.subr.bf16.mxu0 0
        %1000 = vmatpush1.bf16.msra.mxu0 %v987
        %1001 = vmatprep.subr.bf16.mxu0 0
        %1002 = vmatpush1.bf16.msra.mxu0 %v986
        %1003 = vmatprep.subr.bf16.mxu0 0
        %1004 = vmatpush1.bf16.msra.mxu0 %v985
        %1005 = vmatprep.subr.bf16.mxu0 0
        %1006 = vmatpush1.bf16.msra.mxu0 %v984
        %1007 = vmatprep.subr.bf16.mxu0 0
        %1008 = vmatpush1.bf16.msra.mxu0 %v983
        %1009 = vmatprep.subr.bf16.mxu0 0
        %1010 = vmatpush1.bf16.msra.mxu0 %v982
        %1011 = vmatprep.subr.bf16.mxu0 0
        %1012 = vmatpush1.bf16.msra.mxu0 %v981
        %1013 = vmatprep.subr.bf16.mxu0 0
        %1014 = vmatpush2.bf16.msra.mxu0 0
        %1015 = vmatprep.subr.bf16.mxu0 0
        %1016 = vmatpush2.bf16.msra.mxu0 0
        %1017 = vmatprep.subr.bf16.mxu0 0
        %1018 = vmatpush2.bf16.msra.mxu0 0
        %1019 = vmatprep.subr.bf16.mxu0 0
        %1020 = vmatpush2.bf16.msra.mxu0 0
        %1021 = vmatprep.subr.bf16.mxu0 0
        %1022 = vmatpush2.bf16.msra.mxu0 0
        %1023 = vmatprep.subr.bf16.mxu0 0
        %1024 = vmatpush2.bf16.msra.mxu0 0
        %1025 = vmatprep.subr.bf16.mxu0 0
        %1026 = vmatpush2.bf16.msra.mxu0 0
        %1027 = vmatprep.subr.bf16.mxu0 0
        %1028 = vmatpush2.bf16.msra.mxu0 0
        %1029 = vmatprep.mubr.bf16.mxu0 0
        %1030 = vmatmul.mubr.bf16.gmra.mxu0 %v546
        %v1031 = vpop.f32.mrf.mxu0
        %v1032 = vadd.f32 0.0, %v1031
        %v1033 = vpop.f32.mrf.mxu0
        %v1034 = vpop.f32.mrf.mxu0
        %v1035 = vadd.f32 0.0, %v1034
        %v1036 = vpop.f32.mrf.mxu0
        %1037 = vmatprep.mubr.bf16.mxu0 0
        %1038 = vmatmul.mubr.bf16.gmra.mxu0 %v547
        %v1039 = vpop.f32.mrf.mxu0
        %v1040 = vadd.f32 0.0, %v1039
        %v1041 = vpop.f32.mrf.mxu0
        %v1042 = vpop.f32.mrf.mxu0
        %v1043 = vadd.f32 0.0, %v1042
        %v1044 = vpop.f32.mrf.mxu0
        %1045 = vdwg.mxu0
        %v1046 = vpack.c.bf16 %v1035, %v1032
        %v1047 = vpack.c.bf16 %v1043, %v1040
        %v1050 = vunpack.c.l.b16 %v1046
        %v1051 = vunpack.c.h.b16 %v1046
        %v1052 = vunpack.c.l.b16 %v1047
        %v1053 = vunpack.c.h.b16 %v1047
        %v1054 = vpack.c.b16 %v1050, %v1050
        %v1055 = vpack.c.b16 %v1051, %v1051
        %v1056 = vpack.c.b16 %v1052, %v1052
        %v1057 = vpack.c.b16 %v1053, %v1053
        %1062 = vst [vmem:[#allocation4 + $0x30] sm:$0xf] %v1054
        %1063 = vst [vmem:[#allocation4 + $0x34] sm:$0xf] %v1055
        %1064 = vst [vmem:[#allocation4 + $0x38] sm:$0xf] %v1056
        %1065 = vst [vmem:[#allocation4 + $0x3c] sm:$0xf] %v1057
        %v1066 = vld [vmem:[#allocation10 + $0x10] sm:$0xf]
        %v1067 = vld [vmem:[#allocation10 + $0x30] sm:$0xf]
        %v1068 = vld [vmem:[#allocation10 + $0x50] sm:$0xf]
        %v1069 = vld [vmem:[#allocation10 + $0x70] sm:$0xf]
        %v1070 = vld [vmem:[#allocation10 + $0x90] sm:$0xf]
        %v1071 = vld [vmem:[#allocation10 + $0xb0] sm:$0xf]
        %v1072 = vld [vmem:[#allocation10 + $0xd0] sm:$0xf]
        %v1073 = vld [vmem:[#allocation10 + $0xf0] sm:$0xf]
        %v1074 = vld [vmem:[#allocation10 + $0x110] sm:$0xf]
        %v1075 = vld [vmem:[#allocation10 + $0x130] sm:$0xf]
        %v1076 = vld [vmem:[#allocation10 + $0x150] sm:$0xf]
        %v1077 = vld [vmem:[#allocation10 + $0x170] sm:$0xf]
        %v1078 = vld [vmem:[#allocation10 + $0x190] sm:$0xf]
        %v1079 = vld [vmem:[#allocation10 + $0x1b0] sm:$0xf]
        %v1080 = vld [vmem:[#allocation10 + $0x1d0] sm:$0xf]
        %v1081 = vld [vmem:[#allocation10 + $0x1f0] sm:$0xf]
        %v1098 = vunpack.c.l.b16 %v1066
        %v1099 = vunpack.c.l.b16 %v1067
        %v1100 = vunpack.c.l.b16 %v1068
        %v1101 = vunpack.c.l.b16 %v1069
        %v1102 = vunpack.c.l.b16 %v1070
        %v1103 = vunpack.c.l.b16 %v1071
        %v1104 = vunpack.c.l.b16 %v1072
        %v1105 = vunpack.c.l.b16 %v1073
        %v1106 = vunpack.c.l.b16 %v1074
        %v1107 = vunpack.c.l.b16 %v1075
        %v1108 = vunpack.c.l.b16 %v1076
        %v1109 = vunpack.c.l.b16 %v1077
        %v1110 = vunpack.c.l.b16 %v1078
        %v1111 = vunpack.c.l.b16 %v1079
        %v1112 = vunpack.c.l.b16 %v1080
        %v1113 = vunpack.c.l.b16 %v1081
        %v1114 = vpack.c.b16 %v1099, %v1098
        %v1115 = vpack.c.b16 %v1101, %v1100
        %v1116 = vpack.c.b16 %v1103, %v1102
        %v1117 = vpack.c.b16 %v1105, %v1104
        %v1118 = vpack.c.b16 %v1107, %v1106
        %v1119 = vpack.c.b16 %v1109, %v1108
        %v1120 = vpack.c.b16 %v1111, %v1110
        %v1121 = vpack.c.b16 %v1113, %v1112
        %1130 = vmatprep.subr.bf16.mxu0 0
        %1131 = vmatpush1.bf16.msra.mxu0 %v1121
        %1132 = vmatprep.subr.bf16.mxu0 0
        %1133 = vmatpush1.bf16.msra.mxu0 %v1120
        %1134 = vmatprep.subr.bf16.mxu0 0
        %1135 = vmatpush1.bf16.msra.mxu0 %v1119
        %1136 = vmatprep.subr.bf16.mxu0 0
        %1137 = vmatpush1.bf16.msra.mxu0 %v1118
        %1138 = vmatprep.subr.bf16.mxu0 0
        %1139 = vmatpush1.bf16.msra.mxu0 %v1117
        %1140 = vmatprep.subr.bf16.mxu0 0
        %1141 = vmatpush1.bf16.msra.mxu0 %v1116
        %1142 = vmatprep.subr.bf16.mxu0 0
        %1143 = vmatpush1.bf16.msra.mxu0 %v1115
        %1144 = vmatprep.subr.bf16.mxu0 0
        %1145 = vmatpush1.bf16.msra.mxu0 %v1114
        %1146 = vmatprep.subr.bf16.mxu0 0
        %1147 = vmatpush2.bf16.msra.mxu0 0
        %1148 = vmatprep.subr.bf16.mxu0 0
        %1149 = vmatpush2.bf16.msra.mxu0 0
        %1150 = vmatprep.subr.bf16.mxu0 0
        %1151 = vmatpush2.bf16.msra.mxu0 0
        %1152 = vmatprep.subr.bf16.mxu0 0
        %1153 = vmatpush2.bf16.msra.mxu0 0
        %1154 = vmatprep.subr.bf16.mxu0 0
        %1155 = vmatpush2.bf16.msra.mxu0 0
        %1156 = vmatprep.subr.bf16.mxu0 0
        %1157 = vmatpush2.bf16.msra.mxu0 0
        %1158 = vmatprep.subr.bf16.mxu0 0
        %1159 = vmatpush2.bf16.msra.mxu0 0
        %1160 = vmatprep.subr.bf16.mxu0 0
        %1161 = vmatpush2.bf16.msra.mxu0 0
        %1162 = vmatprep.mubr.bf16.mxu0 0
        %1163 = vmatmul.mubr.bf16.gmra.mxu0 %v546
        %v1164 = vpop.f32.mrf.mxu0
        %v1165 = vadd.f32 0.0, %v1164
        %v1166 = vpop.f32.mrf.mxu0
        %v1167 = vpop.f32.mrf.mxu0
        %v1168 = vadd.f32 0.0, %v1167
        %v1169 = vpop.f32.mrf.mxu0
        %1170 = vmatprep.mubr.bf16.mxu0 0
        %1171 = vmatmul.mubr.bf16.gmra.mxu0 %v547
        %v1172 = vpop.f32.mrf.mxu0
        %v1173 = vadd.f32 0.0, %v1172
        %v1174 = vpop.f32.mrf.mxu0
        %v1175 = vpop.f32.mrf.mxu0
        %v1176 = vadd.f32 0.0, %v1175
        %v1177 = vpop.f32.mrf.mxu0
        %1178 = vdwg.mxu0
        %v1179 = vpack.c.bf16 %v1168, %v1165
        %v1180 = vpack.c.bf16 %v1176, %v1173
        %v1183 = vunpack.c.l.b16 %v1179
        %v1184 = vunpack.c.h.b16 %v1179
        %v1185 = vunpack.c.l.b16 %v1180
        %v1186 = vunpack.c.h.b16 %v1180
        %v1187 = vpack.c.b16 %v1183, %v1183
        %v1188 = vpack.c.b16 %v1184, %v1184
        %v1189 = vpack.c.b16 %v1185, %v1185
        %v1190 = vpack.c.b16 %v1186, %v1186
        %1195 = vst [vmem:[#allocation4 + $0x40] sm:$0xf] %v1187
        %1196 = vst [vmem:[#allocation4 + $0x44] sm:$0xf] %v1188
        %1197 = vst [vmem:[#allocation4 + $0x48] sm:$0xf] %v1189
        %1198 = vst [vmem:[#allocation4 + $0x4c] sm:$0xf] %v1190
        %v1199 = vld [vmem:[#allocation10 + $0x14] sm:$0xf]
        %v1200 = vld [vmem:[#allocation10 + $0x34] sm:$0xf]
        %v1201 = vld [vmem:[#allocation10 + $0x54] sm:$0xf]
        %v1202 = vld [vmem:[#allocation10 + $0x74] sm:$0xf]
        %v1203 = vld [vmem:[#allocation10 + $0x94] sm:$0xf]
        %v1204 = vld [vmem:[#allocation10 + $0xb4] sm:$0xf]
        %v1205 = vld [vmem:[#allocation10 + $0xd4] sm:$0xf]
        %v1206 = vld [vmem:[#allocation10 + $0xf4] sm:$0xf]
        %v1207 = vld [vmem:[#allocation10 + $0x114] sm:$0xf]
        %v1208 = vld [vmem:[#allocation10 + $0x134] sm:$0xf]
        %v1209 = vld [vmem:[#allocation10 + $0x154] sm:$0xf]
        %v1210 = vld [vmem:[#allocation10 + $0x174] sm:$0xf]
        %v1211 = vld [vmem:[#allocation10 + $0x194] sm:$0xf]
        %v1212 = vld [vmem:[#allocation10 + $0x1b4] sm:$0xf]
        %v1213 = vld [vmem:[#allocation10 + $0x1d4] sm:$0xf]
        %v1214 = vld [vmem:[#allocation10 + $0x1f4] sm:$0xf]
        %v1231 = vunpack.c.l.b16 %v1199
        %v1232 = vunpack.c.l.b16 %v1200
        %v1233 = vunpack.c.l.b16 %v1201
        %v1234 = vunpack.c.l.b16 %v1202
        %v1235 = vunpack.c.l.b16 %v1203
        %v1236 = vunpack.c.l.b16 %v1204
        %v1237 = vunpack.c.l.b16 %v1205
        %v1238 = vunpack.c.l.b16 %v1206
        %v1239 = vunpack.c.l.b16 %v1207
        %v1240 = vunpack.c.l.b16 %v1208
        %v1241 = vunpack.c.l.b16 %v1209
        %v1242 = vunpack.c.l.b16 %v1210
        %v1243 = vunpack.c.l.b16 %v1211
        %v1244 = vunpack.c.l.b16 %v1212
        %v1245 = vunpack.c.l.b16 %v1213
        %v1246 = vunpack.c.l.b16 %v1214
        %v1247 = vpack.c.b16 %v1232, %v1231
        %v1248 = vpack.c.b16 %v1234, %v1233
        %v1249 = vpack.c.b16 %v1236, %v1235
        %v1250 = vpack.c.b16 %v1238, %v1237
        %v1251 = vpack.c.b16 %v1240, %v1239
        %v1252 = vpack.c.b16 %v1242, %v1241
        %v1253 = vpack.c.b16 %v1244, %v1243
        %v1254 = vpack.c.b16 %v1246, %v1245
        %1263 = vmatprep.subr.bf16.mxu0 0
        %1264 = vmatpush1.bf16.msra.mxu0 %v1254
        %1265 = vmatprep.subr.bf16.mxu0 0
        %1266 = vmatpush1.bf16.msra.mxu0 %v1253
        %1267 = vmatprep.subr.bf16.mxu0 0
        %1268 = vmatpush1.bf16.msra.mxu0 %v1252
        %1269 = vmatprep.subr.bf16.mxu0 0
        %1270 = vmatpush1.bf16.msra.mxu0 %v1251
        %1271 = vmatprep.subr.bf16.mxu0 0
        %1272 = vmatpush1.bf16.msra.mxu0 %v1250
        %1273 = vmatprep.subr.bf16.mxu0 0
        %1274 = vmatpush1.bf16.msra.mxu0 %v1249
        %1275 = vmatprep.subr.bf16.mxu0 0
        %1276 = vmatpush1.bf16.msra.mxu0 %v1248
        %1277 = vmatprep.subr.bf16.mxu0 0
        %1278 = vmatpush1.bf16.msra.mxu0 %v1247
        %1279 = vmatprep.subr.bf16.mxu0 0
        %1280 = vmatpush2.bf16.msra.mxu0 0
        %1281 = vmatprep.subr.bf16.mxu0 0
        %1282 = vmatpush2.bf16.msra.mxu0 0
        %1283 = vmatprep.subr.bf16.mxu0 0
        %1284 = vmatpush2.bf16.msra.mxu0 0
        %1285 = vmatprep.subr.bf16.mxu0 0
        %1286 = vmatpush2.bf16.msra.mxu0 0
        %1287 = vmatprep.subr.bf16.mxu0 0
        %1288 = vmatpush2.bf16.msra.mxu0 0
        %1289 = vmatprep.subr.bf16.mxu0 0
        %1290 = vmatpush2.bf16.msra.mxu0 0
        %1291 = vmatprep.subr.bf16.mxu0 0
        %1292 = vmatpush2.bf16.msra.mxu0 0
        %1293 = vmatprep.subr.bf16.mxu0 0
        %1294 = vmatpush2.bf16.msra.mxu0 0
        %1295 = vmatprep.mubr.bf16.mxu0 0
        %1296 = vmatmul.mubr.bf16.gmra.mxu0 %v546
        %v1297 = vpop.f32.mrf.mxu0
        %v1298 = vadd.f32 0.0, %v1297
        %v1299 = vpop.f32.mrf.mxu0
        %v1300 = vpop.f32.mrf.mxu0
        %v1301 = vadd.f32 0.0, %v1300
        %v1302 = vpop.f32.mrf.mxu0
        %1303 = vmatprep.mubr.bf16.mxu0 0
        %1304 = vmatmul.mubr.bf16.gmra.mxu0 %v547
        %v1305 = vpop.f32.mrf.mxu0
        %v1306 = vadd.f32 0.0, %v1305
        %v1307 = vpop.f32.mrf.mxu0
        %v1308 = vpop.f32.mrf.mxu0
        %v1309 = vadd.f32 0.0, %v1308
        %v1310 = vpop.f32.mrf.mxu0
        %1311 = vdwg.mxu0
        %v1312 = vpack.c.bf16 %v1301, %v1298
        %v1313 = vpack.c.bf16 %v1309, %v1306
        %v1316 = vunpack.c.l.b16 %v1312
        %v1317 = vunpack.c.h.b16 %v1312
        %v1318 = vunpack.c.l.b16 %v1313
        %v1319 = vunpack.c.h.b16 %v1313
        %v1320 = vpack.c.b16 %v1316, %v1316
        %v1321 = vpack.c.b16 %v1317, %v1317
        %v1322 = vpack.c.b16 %v1318, %v1318
        %v1323 = vpack.c.b16 %v1319, %v1319
        %1328 = vst [vmem:[#allocation4 + $0x50] sm:$0xf] %v1320
        %1329 = vst [vmem:[#allocation4 + $0x54] sm:$0xf] %v1321
        %1330 = vst [vmem:[#allocation4 + $0x58] sm:$0xf] %v1322
        %1331 = vst [vmem:[#allocation4 + $0x5c] sm:$0xf] %v1323
        %v1332 = vld [vmem:[#allocation10 + $0x18] sm:$0xf]
        %v1333 = vld [vmem:[#allocation10 + $0x38] sm:$0xf]
        %v1334 = vld [vmem:[#allocation10 + $0x58] sm:$0xf]
        %v1335 = vld [vmem:[#allocation10 + $0x78] sm:$0xf]
        %v1336 = vld [vmem:[#allocation10 + $0x98] sm:$0xf]
        %v1337 = vld [vmem:[#allocation10 + $0xb8] sm:$0xf]
        %v1338 = vld [vmem:[#allocation10 + $0xd8] sm:$0xf]
        %v1339 = vld [vmem:[#allocation10 + $0xf8] sm:$0xf]
        %v1340 = vld [vmem:[#allocation10 + $0x118] sm:$0xf]
        %v1341 = vld [vmem:[#allocation10 + $0x138] sm:$0xf]
        %v1342 = vld [vmem:[#allocation10 + $0x158] sm:$0xf]
        %v1343 = vld [vmem:[#allocation10 + $0x178] sm:$0xf]
        %v1344 = vld [vmem:[#allocation10 + $0x198] sm:$0xf]
        %v1345 = vld [vmem:[#allocation10 + $0x1b8] sm:$0xf]
        %v1346 = vld [vmem:[#allocation10 + $0x1d8] sm:$0xf]
        %v1347 = vld [vmem:[#allocation10 + $0x1f8] sm:$0xf]
        %v1364 = vunpack.c.l.b16 %v1332
        %v1365 = vunpack.c.l.b16 %v1333
        %v1366 = vunpack.c.l.b16 %v1334
        %v1367 = vunpack.c.l.b16 %v1335
        %v1368 = vunpack.c.l.b16 %v1336
        %v1369 = vunpack.c.l.b16 %v1337
        %v1370 = vunpack.c.l.b16 %v1338
        %v1371 = vunpack.c.l.b16 %v1339
        %v1372 = vunpack.c.l.b16 %v1340
        %v1373 = vunpack.c.l.b16 %v1341
        %v1374 = vunpack.c.l.b16 %v1342
        %v1375 = vunpack.c.l.b16 %v1343
        %v1376 = vunpack.c.l.b16 %v1344
        %v1377 = vunpack.c.l.b16 %v1345
        %v1378 = vunpack.c.l.b16 %v1346
        %v1379 = vunpack.c.l.b16 %v1347
        %v1380 = vpack.c.b16 %v1365, %v1364
        %v1381 = vpack.c.b16 %v1367, %v1366
        %v1382 = vpack.c.b16 %v1369, %v1368
        %v1383 = vpack.c.b16 %v1371, %v1370
        %v1384 = vpack.c.b16 %v1373, %v1372
        %v1385 = vpack.c.b16 %v1375, %v1374
        %v1386 = vpack.c.b16 %v1377, %v1376
        %v1387 = vpack.c.b16 %v1379, %v1378
        %1396 = vmatprep.subr.bf16.mxu0 0
        %1397 = vmatpush1.bf16.msra.mxu0 %v1387
        %1398 = vmatprep.subr.bf16.mxu0 0
        %1399 = vmatpush1.bf16.msra.mxu0 %v1386
        %1400 = vmatprep.subr.bf16.mxu0 0
        %1401 = vmatpush1.bf16.msra.mxu0 %v1385
        %1402 = vmatprep.subr.bf16.mxu0 0
        %1403 = vmatpush1.bf16.msra.mxu0 %v1384
        %1404 = vmatprep.subr.bf16.mxu0 0
        %1405 = vmatpush1.bf16.msra.mxu0 %v1383
        %1406 = vmatprep.subr.bf16.mxu0 0
        %1407 = vmatpush1.bf16.msra.mxu0 %v1382
        %1408 = vmatprep.subr.bf16.mxu0 0
        %1409 = vmatpush1.bf16.msra.mxu0 %v1381
        %1410 = vmatprep.subr.bf16.mxu0 0
        %1411 = vmatpush1.bf16.msra.mxu0 %v1380
        %1412 = vmatprep.subr.bf16.mxu0 0
        %1413 = vmatpush2.bf16.msra.mxu0 0
        %1414 = vmatprep.subr.bf16.mxu0 0
        %1415 = vmatpush2.bf16.msra.mxu0 0
        %1416 = vmatprep.subr.bf16.mxu0 0
        %1417 = vmatpush2.bf16.msra.mxu0 0
        %1418 = vmatprep.subr.bf16.mxu0 0
        %1419 = vmatpush2.bf16.msra.mxu0 0
        %1420 = vmatprep.subr.bf16.mxu0 0
        %1421 = vmatpush2.bf16.msra.mxu0 0
        %1422 = vmatprep.subr.bf16.mxu0 0
        %1423 = vmatpush2.bf16.msra.mxu0 0
        %1424 = vmatprep.subr.bf16.mxu0 0
        %1425 = vmatpush2.bf16.msra.mxu0 0
        %1426 = vmatprep.subr.bf16.mxu0 0
        %1427 = vmatpush2.bf16.msra.mxu0 0
        %1428 = vmatprep.mubr.bf16.mxu0 0
        %1429 = vmatmul.mubr.bf16.gmra.mxu0 %v546
        %v1430 = vpop.f32.mrf.mxu0
        %v1431 = vadd.f32 0.0, %v1430
        %v1432 = vpop.f32.mrf.mxu0
        %v1433 = vpop.f32.mrf.mxu0
        %v1434 = vadd.f32 0.0, %v1433
        %v1435 = vpop.f32.mrf.mxu0
        %1436 = vmatprep.mubr.bf16.mxu0 0
        %1437 = vmatmul.mubr.bf16.gmra.mxu0 %v547
        %v1438 = vpop.f32.mrf.mxu0
        %v1439 = vadd.f32 0.0, %v1438
        %v1440 = vpop.f32.mrf.mxu0
        %v1441 = vpop.f32.mrf.mxu0
        %v1442 = vadd.f32 0.0, %v1441
        %v1443 = vpop.f32.mrf.mxu0
        %1444 = vdwg.mxu0
        %v1445 = vpack.c.bf16 %v1434, %v1431
        %v1446 = vpack.c.bf16 %v1442, %v1439
        %v1449 = vunpack.c.l.b16 %v1445
        %v1450 = vunpack.c.h.b16 %v1445
        %v1451 = vunpack.c.l.b16 %v1446
        %v1452 = vunpack.c.h.b16 %v1446
        %v1453 = vpack.c.b16 %v1449, %v1449
        %v1454 = vpack.c.b16 %v1450, %v1450
        %v1455 = vpack.c.b16 %v1451, %v1451
        %v1456 = vpack.c.b16 %v1452, %v1452
        %1461 = vst [vmem:[#allocation4 + $0x60] sm:$0xf] %v1453
        %1462 = vst [vmem:[#allocation4 + $0x64] sm:$0xf] %v1454
        %1463 = vst [vmem:[#allocation4 + $0x68] sm:$0xf] %v1455
        %1464 = vst [vmem:[#allocation4 + $0x6c] sm:$0xf] %v1456
        %v1465 = vld [vmem:[#allocation10 + $0x1c] sm:$0xf]
        %v1466 = vld [vmem:[#allocation10 + $0x3c] sm:$0xf]
        %v1467 = vld [vmem:[#allocation10 + $0x5c] sm:$0xf]
        %v1468 = vld [vmem:[#allocation10 + $0x7c] sm:$0xf]
        %v1469 = vld [vmem:[#allocation10 + $0x9c] sm:$0xf]
        %v1470 = vld [vmem:[#allocation10 + $0xbc] sm:$0xf]
        %v1471 = vld [vmem:[#allocation10 + $0xdc] sm:$0xf]
        %v1472 = vld [vmem:[#allocation10 + $0xfc] sm:$0xf]
        %v1473 = vld [vmem:[#allocation10 + $0x11c] sm:$0xf]
        %v1474 = vld [vmem:[#allocation10 + $0x13c] sm:$0xf]
        %v1475 = vld [vmem:[#allocation10 + $0x15c] sm:$0xf]
        %v1476 = vld [vmem:[#allocation10 + $0x17c] sm:$0xf]
        %v1477 = vld [vmem:[#allocation10 + $0x19c] sm:$0xf]
        %v1478 = vld [vmem:[#allocation10 + $0x1bc] sm:$0xf]
        %v1479 = vld [vmem:[#allocation10 + $0x1dc] sm:$0xf]
        %v1480 = vld [vmem:[#allocation10 + $0x1fc] sm:$0xf]
        %v1497 = vunpack.c.l.b16 %v1465
        %v1498 = vunpack.c.l.b16 %v1466
        %v1499 = vunpack.c.l.b16 %v1467
        %v1500 = vunpack.c.l.b16 %v1468
        %v1501 = vunpack.c.l.b16 %v1469
        %v1502 = vunpack.c.l.b16 %v1470
        %v1503 = vunpack.c.l.b16 %v1471
        %v1504 = vunpack.c.l.b16 %v1472
        %v1505 = vunpack.c.l.b16 %v1473
        %v1506 = vunpack.c.l.b16 %v1474
        %v1507 = vunpack.c.l.b16 %v1475
        %v1508 = vunpack.c.l.b16 %v1476
        %v1509 = vunpack.c.l.b16 %v1477
        %v1510 = vunpack.c.l.b16 %v1478
        %v1511 = vunpack.c.l.b16 %v1479
        %v1512 = vunpack.c.l.b16 %v1480
        %v1513 = vpack.c.b16 %v1498, %v1497
        %v1514 = vpack.c.b16 %v1500, %v1499
        %v1515 = vpack.c.b16 %v1502, %v1501
        %v1516 = vpack.c.b16 %v1504, %v1503
        %v1517 = vpack.c.b16 %v1506, %v1505
        %v1518 = vpack.c.b16 %v1508, %v1507
        %v1519 = vpack.c.b16 %v1510, %v1509
        %v1520 = vpack.c.b16 %v1512, %v1511
        %1529 = vmatprep.subr.bf16.mxu0 0
        %1530 = vmatpush1.bf16.msra.mxu0 %v1520
        %1531 = vmatprep.subr.bf16.mxu0 0
        %1532 = vmatpush1.bf16.msra.mxu0 %v1519
        %1533 = vmatprep.subr.bf16.mxu0 0
        %1534 = vmatpush1.bf16.msra.mxu0 %v1518
        %1535 = vmatprep.subr.bf16.mxu0 0
        %1536 = vmatpush1.bf16.msra.mxu0 %v1517
        %1537 = vmatprep.subr.bf16.mxu0 0
        %1538 = vmatpush1.bf16.msra.mxu0 %v1516
        %1539 = vmatprep.subr.bf16.mxu0 0
        %1540 = vmatpush1.bf16.msra.mxu0 %v1515
        %1541 = vmatprep.subr.bf16.mxu0 0
        %1542 = vmatpush1.bf16.msra.mxu0 %v1514
        %1543 = vmatprep.subr.bf16.mxu0 0
        %1544 = vmatpush1.bf16.msra.mxu0 %v1513
        %1545 = vmatprep.subr.bf16.mxu0 0
        %1546 = vmatpush2.bf16.msra.mxu0 0
        %1547 = vmatprep.subr.bf16.mxu0 0
        %1548 = vmatpush2.bf16.msra.mxu0 0
        %1549 = vmatprep.subr.bf16.mxu0 0
        %1550 = vmatpush2.bf16.msra.mxu0 0
        %1551 = vmatprep.subr.bf16.mxu0 0
        %1552 = vmatpush2.bf16.msra.mxu0 0
        %1553 = vmatprep.subr.bf16.mxu0 0
        %1554 = vmatpush2.bf16.msra.mxu0 0
        %1555 = vmatprep.subr.bf16.mxu0 0
        %1556 = vmatpush2.bf16.msra.mxu0 0
        %1557 = vmatprep.subr.bf16.mxu0 0
        %1558 = vmatpush2.bf16.msra.mxu0 0
        %1559 = vmatprep.subr.bf16.mxu0 0
        %1560 = vmatpush2.bf16.msra.mxu0 0
        %1561 = vmatprep.mubr.bf16.mxu0 0
        %1562 = vmatmul.mubr.bf16.gmra.mxu0 %v546
        %v1563 = vpop.f32.mrf.mxu0
        %v1564 = vadd.f32 0.0, %v1563
        %v1565 = vpop.f32.mrf.mxu0
        %v1566 = vpop.f32.mrf.mxu0
        %v1567 = vadd.f32 0.0, %v1566
        %v1568 = vpop.f32.mrf.mxu0
        %1569 = vmatprep.mubr.bf16.mxu0 0
        %1570 = vmatmul.mubr.bf16.gmra.mxu0 %v547
        %v1571 = vpop.f32.mrf.mxu0
        %v1572 = vadd.f32 0.0, %v1571
        %v1573 = vpop.f32.mrf.mxu0
        %v1574 = vpop.f32.mrf.mxu0
        %v1575 = vadd.f32 0.0, %v1574
        %v1576 = vpop.f32.mrf.mxu0
        %1577 = vdwg.mxu0
        %v1578 = vpack.c.bf16 %v1567, %v1564
        %v1579 = vpack.c.bf16 %v1575, %v1572
        %v1582 = vunpack.c.l.b16 %v1578
        %v1583 = vunpack.c.h.b16 %v1578
        %v1584 = vunpack.c.l.b16 %v1579
        %v1585 = vunpack.c.h.b16 %v1579
        %v1586 = vpack.c.b16 %v1582, %v1582
        %v1587 = vpack.c.b16 %v1583, %v1583
        %v1588 = vpack.c.b16 %v1584, %v1584
        %v1589 = vpack.c.b16 %v1585, %v1585
        %1594 = vst [vmem:[#allocation4 + $0x70] sm:$0xf] %v1586
        %1595 = vst [vmem:[#allocation4 + $0x74] sm:$0xf] %v1587
        %1596 = vst [vmem:[#allocation4 + $0x78] sm:$0xf] %v1588
        %1597 = vst [vmem:[#allocation4 + $0x7c] sm:$0xf] %v1589
        %v1598 = vld [vmem:[#allocation2] sm:$0xff]
        %v1599 = vld [vmem:[#allocation2 + $0x8] sm:$0xff]
        %v1600 = vld [vmem:[#allocation2 + $0x10] sm:$0xff]
        %v1601 = vld [vmem:[#allocation2 + $0x18] sm:$0xff]
        %v1602 = vld [vmem:[%s304] sm:$0xff]
        %v1603 = vld [vmem:[%s304 + $0x8] sm:$0xff]
        %v1604 = vld [vmem:[%s304 + $0x10] sm:$0xff]
        %v1605 = vld [vmem:[%s304 + $0x18] sm:$0xff]
        %v1606 = vld [vmem:[#allocation4] sm:$0xf]
        %v1607 = vld [vmem:[#allocation4 + $0x4] sm:$0xf]
        %v1608 = vld [vmem:[#allocation4 + $0x8] sm:$0xf]
        %v1609 = vld [vmem:[#allocation4 + $0xc] sm:$0xf]
        %v1610 = vld [vmem:[#allocation4 + $0x10] sm:$0xf]
        %v1611 = vld [vmem:[#allocation4 + $0x14] sm:$0xf]
        %v1612 = vld [vmem:[#allocation4 + $0x18] sm:$0xf]
        %v1613 = vld [vmem:[#allocation4 + $0x1c] sm:$0xf]
        %v1614 = vld [vmem:[#allocation4 + $0x20] sm:$0xf]
        %v1615 = vld [vmem:[#allocation4 + $0x24] sm:$0xf]
        %v1616 = vld [vmem:[#allocation4 + $0x28] sm:$0xf]
        %v1617 = vld [vmem:[#allocation4 + $0x2c] sm:$0xf]
        %v1618 = vld [vmem:[#allocation4 + $0x30] sm:$0xf]
        %v1619 = vld [vmem:[#allocation4 + $0x34] sm:$0xf]
        %v1620 = vld [vmem:[#allocation4 + $0x38] sm:$0xf]
        %v1621 = vld [vmem:[#allocation4 + $0x3c] sm:$0xf]
        %v1622 = vld [vmem:[#allocation4 + $0x40] sm:$0xf]
        %v1623 = vld [vmem:[#allocation4 + $0x44] sm:$0xf]
        %v1624 = vld [vmem:[#allocation4 + $0x48] sm:$0xf]
        %v1625 = vld [vmem:[#allocation4 + $0x4c] sm:$0xf]
        %v1626 = vld [vmem:[#allocation4 + $0x50] sm:$0xf]
        %v1627 = vld [vmem:[#allocation4 + $0x54] sm:$0xf]
        %v1628 = vld [vmem:[#allocation4 + $0x58] sm:$0xf]
        %v1629 = vld [vmem:[#allocation4 + $0x5c] sm:$0xf]
        %v1630 = vld [vmem:[#allocation4 + $0x60] sm:$0xf]
        %v1631 = vld [vmem:[#allocation4 + $0x64] sm:$0xf]
        %v1632 = vld [vmem:[#allocation4 + $0x68] sm:$0xf]
        %v1633 = vld [vmem:[#allocation4 + $0x6c] sm:$0xf]
        %v1634 = vld [vmem:[#allocation4 + $0x70] sm:$0xf]
        %v1635 = vld [vmem:[#allocation4 + $0x74] sm:$0xf]
        %v1636 = vld [vmem:[#allocation4 + $0x78] sm:$0xf]
        %v1637 = vld [vmem:[#allocation4 + $0x7c] sm:$0xf]
        %v1642 = vunpack.c.l.b16 %v1602
        %v1643 = vunpack.c.h.b16 %v1602
        %v1644 = vunpack.c.l.b16 %v1603
        %v1645 = vunpack.c.h.b16 %v1603
        %v1646 = vunpack.c.l.b16 %v1604
        %v1647 = vunpack.c.h.b16 %v1604
        %v1648 = vunpack.c.l.b16 %v1605
        %v1649 = vunpack.c.h.b16 %v1605
        %v1650 = vpack.c.b16 %v1644, %v1642
        %v1651 = vpack.c.b16 %v1645, %v1643
        %v1652 = vpack.c.b16 %v1648, %v1646
        %v1653 = vpack.c.b16 %v1649, %v1647
        %v1690 = vunpack.c.l.b16 %v1606
        %v1691 = vunpack.c.l.b16 %v1607
        %v1692 = vunpack.c.l.b16 %v1608
        %v1693 = vunpack.c.l.b16 %v1609
        %v1694 = vunpack.c.l.b16 %v1610
        %v1695 = vunpack.c.l.b16 %v1611
        %v1696 = vunpack.c.l.b16 %v1612
        %v1697 = vunpack.c.l.b16 %v1613
        %v1698 = vunpack.c.l.b16 %v1614
        %v1699 = vunpack.c.l.b16 %v1615
        %v1700 = vunpack.c.l.b16 %v1616
        %v1701 = vunpack.c.l.b16 %v1617
        %v1702 = vunpack.c.l.b16 %v1618
        %v1703 = vunpack.c.l.b16 %v1619
        %v1704 = vunpack.c.l.b16 %v1620
        %v1705 = vunpack.c.l.b16 %v1621
        %v1706 = vunpack.c.l.b16 %v1622
        %v1707 = vunpack.c.l.b16 %v1623
        %v1708 = vunpack.c.l.b16 %v1624
        %v1709 = vunpack.c.l.b16 %v1625
        %v1710 = vunpack.c.l.b16 %v1626
        %v1711 = vunpack.c.l.b16 %v1627
        %v1712 = vunpack.c.l.b16 %v1628
        %v1713 = vunpack.c.l.b16 %v1629
        %v1714 = vunpack.c.l.b16 %v1630
        %v1715 = vunpack.c.l.b16 %v1631
        %v1716 = vunpack.c.l.b16 %v1632
        %v1717 = vunpack.c.l.b16 %v1633
        %v1718 = vunpack.c.l.b16 %v1634
        %v1719 = vunpack.c.l.b16 %v1635
        %v1720 = vunpack.c.l.b16 %v1636
        %v1721 = vunpack.c.l.b16 %v1637
        %v1722 = vpack.c.b16 %v1691, %v1690
        %v1723 = vpack.c.b16 %v1693, %v1692
        %v1724 = vpack.c.b16 %v1695, %v1694
        %v1725 = vpack.c.b16 %v1697, %v1696
        %v1726 = vpack.c.b16 %v1699, %v1698
        %v1727 = vpack.c.b16 %v1701, %v1700
        %v1728 = vpack.c.b16 %v1703, %v1702
        %v1729 = vpack.c.b16 %v1705, %v1704
        %v1730 = vpack.c.b16 %v1707, %v1706
        %v1731 = vpack.c.b16 %v1709, %v1708
        %v1732 = vpack.c.b16 %v1711, %v1710
        %v1733 = vpack.c.b16 %v1713, %v1712
        %v1734 = vpack.c.b16 %v1715, %v1714
        %v1735 = vpack.c.b16 %v1717, %v1716
        %v1736 = vpack.c.b16 %v1719, %v1718
        %v1737 = vpack.c.b16 %v1721, %v1720
        %1754 = vmatprep.subr.bf16.mxu0 0
        %1755 = vmatpush1.bf16.msra.mxu0 %v1729
        %1756 = vmatprep.subr.bf16.mxu0 0
        %1757 = vmatpush1.bf16.msra.mxu0 %v1728
        %1758 = vmatprep.subr.bf16.mxu0 0
        %1759 = vmatpush1.bf16.msra.mxu0 %v1727
        %1760 = vmatprep.subr.bf16.mxu0 0
        %1761 = vmatpush1.bf16.msra.mxu0 %v1726
        %1762 = vmatprep.subr.bf16.mxu0 0
        %1763 = vmatpush1.bf16.msra.mxu0 %v1725
        %1764 = vmatprep.subr.bf16.mxu0 0
        %1765 = vmatpush1.bf16.msra.mxu0 %v1724
        %1766 = vmatprep.subr.bf16.mxu0 0
        %1767 = vmatpush1.bf16.msra.mxu0 %v1723
        %1768 = vmatprep.subr.bf16.mxu0 0
        %1769 = vmatpush1.bf16.msra.mxu0 %v1722
        %1770 = vmatprep.subr.bf16.mxu0 0
        %1771 = vmatpush2.bf16.msra.mxu0 %v1737
        %1772 = vmatprep.subr.bf16.mxu0 0
        %1773 = vmatpush2.bf16.msra.mxu0 %v1736
        %1774 = vmatprep.subr.bf16.mxu0 0
        %1775 = vmatpush2.bf16.msra.mxu0 %v1735
        %1776 = vmatprep.subr.bf16.mxu0 0
        %1777 = vmatpush2.bf16.msra.mxu0 %v1734
        %1778 = vmatprep.subr.bf16.mxu0 0
        %1779 = vmatpush2.bf16.msra.mxu0 %v1733
        %1780 = vmatprep.subr.bf16.mxu0 0
        %1781 = vmatpush2.bf16.msra.mxu0 %v1732
        %1782 = vmatprep.subr.bf16.mxu0 0
        %1783 = vmatpush2.bf16.msra.mxu0 %v1731
        %1784 = vmatprep.subr.bf16.mxu0 0
        %1785 = vmatpush2.bf16.msra.mxu0 %v1730
        %1786 = vmatprep.mubr.bf16.mxu0 %v1651
        %1787 = vmatmul.mubr.bf16.gmra.mxu0 %v1650
        %v1788 = vpop.f32.mrf.mxu0
        %v1789 = vadd.f32 0.0, %v1788
        %v1790 = vpop.f32.mrf.mxu0
        %v1791 = vpop.f32.mrf.mxu0
        %v1792 = vadd.f32 0.0, %v1791
        %v1793 = vpop.f32.mrf.mxu0
        %1794 = vmatprep.mubr.bf16.mxu0 %v1653
        %1795 = vmatmul.mubr.bf16.gmra.mxu0 %v1652
        %v1796 = vpop.f32.mrf.mxu0
        %v1797 = vadd.f32 0.0, %v1796
        %v1798 = vpop.f32.mrf.mxu0
        %v1799 = vpop.f32.mrf.mxu0
        %v1800 = vadd.f32 0.0, %v1799
        %v1801 = vpop.f32.mrf.mxu0
        %1802 = vdwg.mxu0
        %v1803 = vadd.f32 %v1598, %v1789
        %v1804 = vadd.f32 %v1599, %v1792
        %v1805 = vadd.f32 %v1600, %v1797
        %v1806 = vadd.f32 %v1601, %v1800
        %1807 = vst [vmem:[#allocation2] sm:$0xff] %v1803
        %1808 = vst [vmem:[#allocation2 + $0x8] sm:$0xff] %v1804
        %1809 = vst [vmem:[#allocation2 + $0x10] sm:$0xff] %v1805
        %1810 = vst [vmem:[#allocation2 + $0x18] sm:$0xff] %v1806
        %p1811 = scmp.eq.s32.totalorder %s34, 1
        // Predicated region
        $region65: #{tpu_custom_call.1} parent=39 // pred_check
          %p1812 = pneg %p1811
        $region66: #{tpu_custom_call.1} parent=39 // pred_check_branch
          %1814 = sbr.rel (%p1812) target = $region68
        $region67: #{tpu_custom_call.1} parent=39 // pred_region
          %v1815 = vld [vmem:[#allocation2] sm:$0xff]
          %v1816 = vld [vmem:[#allocation2 + $0x8] sm:$0xff]
          %v1817 = vld [vmem:[#allocation2 + $0x10] sm:$0xff]
          %v1818 = vld [vmem:[#allocation2 + $0x18] sm:$0xff]
          %v1819 = vld [vmem:[#allocation13] sm:$0x1]
          %v1820 = vlaneseq
          %v1821 = vshrl.u32 %v1820, 7
          %v1822 = vsub.s32 0, %v1821
          %v1823 = vrot.slane %v1819, %v1822
          %v1824 = vadd.f32 %v1815, %v1823
          %v1825 = vadd.f32 %v1816, %v1823
          %v1826 = vadd.f32 %v1817, %v1823
          %v1827 = vadd.f32 %v1818, %v1823
          %v1828 = vmax.f32 %v1824, 0.0
          %v1829 = vmax.f32 %v1825, 0.0
          %v1830 = vmax.f32 %v1826, 0.0
          %v1831 = vmax.f32 %v1827, 0.0
          %v1832 = vld [vmem:[#allocation3] sm:$0xff]
          %v1833 = vld [vmem:[#allocation3 + $0x8] sm:$0xff]
          %v1834 = vld [vmem:[#allocation3 + $0x10] sm:$0xff]
          %v1835 = vld [vmem:[#allocation3 + $0x18] sm:$0xff]
          %v1836 = vadd.f32 %v1828, %v1832
          %v1837 = vadd.f32 %v1829, %v1833
          %v1838 = vadd.f32 %v1830, %v1834
          %v1839 = vadd.f32 %v1831, %v1835
          %1840 = vst [vmem:[%s346] sm:$0xff] %v1836
          %1841 = vst [vmem:[%s346 + $0x8] sm:$0xff] %v1837
          %1842 = vst [vmem:[%s346 + $0x10] sm:$0xff] %v1838
          %1843 = vst [vmem:[%s346 + $0x18] sm:$0xff] %v1839
          %v1844 = vadd.f32 %v1836, %v1837
          %v1845 = vadd.f32 %v1844, %v1838
          %v1846 = vadd.f32 %v1845, %v1839
          %v1847 = vrot.slane %v1846, 4
          %v1848 = vadd.f32 %v1846, %v1847
          %v1849 = vrot.slane %v1848, 2
          %v1850 = vadd.f32 %v1848, %v1849
          %v1851 = vrot.slane %v1850, 1
          %v1852 = vadd.f32 %v1850, %v1851
          %v1853 = vmul.f32 %v1836, %v1836
          %v1854 = vmul.f32 %v1837, %v1837
          %v1855 = vmul.f32 %v1838, %v1838
          %v1856 = vmul.f32 %v1839, %v1839
          %v1857 = vadd.f32 %v1853, %v1854
          %v1858 = vadd.f32 %v1857, %v1855
          %v1859 = vadd.f32 %v1858, %v1856
          %v1860 = vrot.slane %v1859, 4
          %v1861 = vadd.f32 %v1859, %v1860
          %v1862 = vrot.slane %v1861, 2
          %v1863 = vadd.f32 %v1861, %v1862
          %v1864 = vrot.slane %v1863, 1
          %v1865 = vadd.f32 %v1863, %v1864
          %vm1866 = vcmask 1040384
          %v1867 = vsel %vm1866, %v1852, %v1865
          %vm1868 = vcmask 1041408
          %v1869 = vsel %vm1868, %v1867, 0.0
          %1870 = vst [vmem:[%s353] sm:$0xff] %v1869
        $region68: #{tpu_custom_call.1} parent=39 // pred_fallthru
          _
        %s1871 = sand.u32 %s161, 1
        %s1872 = scalar_lea.sflag [#allocation7], %s1871
        %s1873 = sand.u32 %s161, 1
        %s1874 = smul.addr %s1873, 32
        %s1875 = scalar_lea.vmem [#allocation14], %s1874
        %s1876 = sand.u32 %s187, 1
        %s1877 = scalar_lea.sflag [#allocation16], %s1876
        %s1878 = sand.u32 %s187, 1
        %s1879 = smul.addr %s1878, 8
        %s1880 = scalar_lea.vmem [#allocation15], %s1879
        // Predicated region
        $region69: #{tpu_custom_call.1} parent=39 // pred_check
          %p1881 = pneg %p171
        $region70: #{tpu_custom_call.1} parent=39 // pred_check_branch
          %1883 = sbr.rel (%p1881) target = $region72
        $region71: #{tpu_custom_call.1} parent=39 // pred_region
          %s1884 = smul.u32 4, %s33
          %s1886 = ssub.s32 512, 512
          %1887 = vsyncadd %s1872, %s1886
          %s1888 = smul.addr %s1884, 128
          %s1889 = scalar_lea.hbm %s5, %s1888
          %s1890 = sshll.u32 %s1875, 4
          %s1891 = int_to_ptr.vmem [resolvable:$true] %s1890
          %1896 = dma.vmem_to_hbm [thread:$0]  %s1891, 512, %s1889, %s1872, 128, 128, 8
        $region72: #{tpu_custom_call.1} parent=39 // pred_fallthru
          _
        // Predicated region
        $region73: #{tpu_custom_call.1} parent=39 // pred_check
          %p1897 = pneg %p197
        $region74: #{tpu_custom_call.1} parent=39 // pred_check_branch
          %1899 = sbr.rel (%p1897) target = $region76
        $region75: #{tpu_custom_call.1} parent=39 // pred_region
          %s1901 = ssub.s32 128, 128
          %1902 = vsyncadd %s1877, %s1901
          %s1903 = smul.addr %s33, 128
          %s1904 = scalar_lea.hbm %s6, %s1903
          %s1906 = sshll.u32 %s1880, 4
          %s1907 = int_to_ptr.vmem [resolvable:$true] %s1906
          %1909 = dma.vmem_to_hbm [thread:$0]  %s1907, 128, %s1904, %s1877
        $region76: #{tpu_custom_call.1} parent=39 // pred_fallthru
          _
      $region40: #{tpu_custom_call.1} parent=5 // pred_fallthru
        _
      %p1910 = scmp.le.s32.totalorder 2, %s24
      // Predicated region
      $region77: #{tpu_custom_call.1} parent=5 // pred_check
        %p1911 = pneg %p1910
      $region78: #{tpu_custom_call.1} parent=5 // pred_check_branch
        %1913 = sbr.rel (%p1911) target = $region80
      $region79: #{tpu_custom_call.1} parent=5 // pred_region
        %s1914 = ssub.s32 %s24, 2
        // Predicated region
        $region81: #{tpu_custom_call.1} parent=79 // pred_check
          %p1915 = pneg %p177
        $region82: #{tpu_custom_call.1} parent=79 // pred_check_branch
          %1917 = sbr.rel (%p1915) target = $region84
        $region83: #{tpu_custom_call.1} parent=79 // pred_region
          %s1918 = sand.u32 %s162, 1
          %s1919 = scalar_lea.sflag [#allocation7], %s1918
          %s1920 = sand.u32 %s162, 1
          %s1921 = smul.addr %s1920, 32
          %s1922 = scalar_lea.vmem [#allocation14], %s1921
          %1923 = dma.done %s1919, 512
        $region84: #{tpu_custom_call.1} parent=79 // pred_fallthru
          _
        // Predicated region
        $region85: #{tpu_custom_call.1} parent=79 // pred_check
          %p1924 = pneg %p203
        $region86: #{tpu_custom_call.1} parent=79 // pred_check_branch
          %1926 = sbr.rel (%p1924) target = $region88
        $region87: #{tpu_custom_call.1} parent=79 // pred_region
          %s1927 = sand.u32 %s188, 1
          %s1928 = scalar_lea.sflag [#allocation16], %s1927
          %s1929 = sand.u32 %s188, 1
          %s1930 = smul.addr %s1929, 8
          %s1931 = scalar_lea.vmem [#allocation15], %s1930
          %1932 = dma.done %s1928, 128
        $region88: #{tpu_custom_call.1} parent=79 // pred_fallthru
          _
      $region80: #{tpu_custom_call.1} parent=5 // pred_fallthru
        _
    $region6: #{tpu_custom_call.1} parent=1 // loop_footer
      %s28 = sadd.s32 1, %s24
    $region7: #{tpu_custom_call.1} parent=1 // loop_footer_branch
      %23 = sbr.rel target = $region3
    $region8: #{tpu_custom_call.1} parent=1 // loop_exit
      _
    %1933 = vsyncpa [#allocation6], 1
    %s1934 = scalar_lea.sflag [#allocation6], 1
    %1935 = vsyncpa %s1934, 1
    %1936 = vsyncpa [#allocation9], 1
    %1937 = vsyncpa [#allocation12], 1
    %1938 = vsyncpa [#allocation7], 1
    %s1939 = scalar_lea.sflag [#allocation7], 1
    %1940 = vsyncpa %s1939, 1
    %1941 = vsyncpa [#allocation16], 1
    %s1942 = scalar_lea.sflag [#allocation16], 1
    %1943 = vsyncpa %s1942, 1

</llo_original>
